<compile_context>
chip_gen: v7x
topology: tpu7x:2x2x1
jax: 0.10.0
libtpu: 0.0.40
codegen_flags: <defaults>
</compile_context>

<pallas_src>
import jax
import jax.numpy as jnp
from jax.experimental import pallas as pl
from jax.experimental.pallas import tpu as pltpu


def gnn_kernel(x_ref, adj_ref, w0_ref, w1_ref, pooled_ref):
    """One batch tile of Bt graphs per grid step.

    x_ref:      (Bt, N, D)   compute dtype (bf16 or f32)
    adj_ref:    (Bt, N, N)   compute dtype
    w0_ref:     (D, H0)      compute dtype
    w1_ref:     (H0, H1)     compute dtype
    pooled_ref: (Bt, H1)     f32 (max-pooled node features per graph)
    """
    Bt, N, D = x_ref.shape
    H0 = w0_ref.shape[1]
    H1 = w1_ref.shape[1]
    cdt = adj_ref.dtype

    adj = adj_ref[...]                                            # (Bt, N, N)

    # ---- GraphConv layer 1: relu((adj @ x) @ W0) ---------------------------
    # Neighborhood aggregation is inherently per-graph -> batched einsum;
    # the feature projection is one 2D MXU matmul with M = Bt*N rows.
    agg0 = jnp.einsum("bnm,bmd->bnd", adj, x_ref[...],
                      preferred_element_type=jnp.float32)         # (Bt,N,D) f32
    h0 = jnp.dot(agg0.reshape(Bt * N, D).astype(cdt), w0_ref[...],
                 preferred_element_type=jnp.float32)              # (Bt*N,H0) f32
    h0 = jnp.maximum(h0, 0.0)                                     # relu in f32

    # ---- GraphConv layer 2: relu((adj @ h0) @ W1) --------------------------
    agg1 = jnp.einsum("bnm,bmd->bnd", adj,
                      h0.reshape(Bt, N, H0).astype(cdt),
                      preferred_element_type=jnp.float32)         # (Bt,N,H0) f32
    h1 = jnp.dot(agg1.reshape(Bt * N, H0).astype(cdt), w1_ref[...],
                 preferred_element_type=jnp.float32)              # (Bt*N,H1) f32
    h1 = jnp.maximum(h1, 0.0)

    # ---- pool: max over the node dim (dim=1 of (bs, N, H)) -----------------
    # TODO(synk): if real graphs are zero-padded to N nodes, the padded nodes
    # participate in the max exactly as in the PyTorch reference.
    pooled_ref[...] = jnp.max(h1.reshape(Bt, N, H1), axis=1)      # (Bt,H1) f32


def gnn_forward(x, adj, w0, w1, wc, bc, *, block_bs=8,
                compute_dtype=jnp.bfloat16):
    """Full forward: 2x GraphConv -> max-pool -> linear classifier."""
    bs, N, D = x.shape
    H0 = w0.shape[1]
    H1 = w1.shape[1]

    # Batch tiling: Bt graphs per grid step (default Bt=8, N=16 -> M=128 rows
    # for the projection matmuls).  Pad the batch with zero graphs if needed;
    # their pooled features are 0 and are sliced off below.
    Bt = max(1, min(block_bs, bs))
    bs_pad = -(-bs // Bt) * Bt
    if bs_pad != bs:
        pad = bs_pad - bs
        x = jnp.pad(x, ((0, pad), (0, 0), (0, 0)))
        adj = jnp.pad(adj, ((0, pad), (0, 0), (0, 0)))

    # Cast the large operands (adj is N*N per graph) and weights to the MXU
    # compute dtype at the pallas_call boundary; accumulation stays f32.
    xc = x.astype(compute_dtype)
    adjc = adj.astype(compute_dtype)
    w0c = w0.astype(compute_dtype)
    w1c = w1.astype(compute_dtype)

    pooled = pl.pallas_call(
        gnn_kernel,
        out_shape=jax.ShapeDtypeStruct((bs_pad, H1), jnp.float32),
        grid=(bs_pad // Bt,),
        in_specs=[
            pl.BlockSpec((Bt, N, D), lambda b: (b, 0, 0)),   # x tile
            pl.BlockSpec((Bt, N, N), lambda b: (b, 0, 0)),   # adj tile
            # Weights use a constant block index -> resident across the grid.
            pl.BlockSpec((D, H0), lambda b: (0, 0)),
            pl.BlockSpec((H0, H1), lambda b: (0, 0)),
        ],
        out_specs=pl.BlockSpec((Bt, H1), lambda b: (b, 0)),
        compiler_params=pltpu.CompilerParams(
            dimension_semantics=("parallel",)),   # megacore / 2-TC sharding
    )(xc, adjc, w0c, w1c)

    pooled = pooled[:bs]
    # Classifier epilogue ((bs, H1) @ (H1, 1) + bias) in plain JAX: with
    # num_classes=1 an in-kernel store would be a 1-lane masked vst and the
    # dot is a VPU-sized reduction; this also keeps wc/bc out of the kernel's
    # DMA path.
    return (pooled @ wc + bc).astype(jnp.float32)


def reference_forward(x, adj, w0, w1, wc, bc):
    h = jnp.maximum(jnp.einsum("bnm,bmd->bnd", adj, x) @ w0, 0.0)
    h = jnp.maximum(jnp.einsum("bnm,bmd->bnd", adj, h) @ w1, 0.0)
    pooled = jnp.max(h, axis=1)          # reduce_method='max', dim=1
    return pooled @ wc + bc


if __name__ == "__main__":
    # Small shapes consistent with the module: bs=16 graphs, N=16 nodes,
    # feature_dim=4 (featureless=False), planes=[32, 32], num_classes=1.
    bs, N, D = 16, 16, 4
    H0, H1, C = 32, 32, 1

    key = jax.random.PRNGKey(0)
    kx, ka, k0, k1, kc = jax.random.split(key, 5)

    x = jax.random.normal(kx, (bs, N, D), dtype=jnp.float32)
    # symmetric, row-normalized-ish adjacency
    a = jax.random.uniform(ka, (bs, N, N), dtype=jnp.float32)
    adj = (a + jnp.swapaxes(a, 1, 2)) * 0.5
    adj = adj / jnp.sum(adj, axis=-1, keepdims=True)

    # Deterministic parameter init (xavier-like scaling).
    w0 = jax.random.normal(k0, (D, H0), dtype=jnp.float32) * (1.0 / jnp.sqrt(D))
    w1 = jax.random.normal(k1, (H0, H1), dtype=jnp.float32) * (1.0 / jnp.sqrt(H0))
    wc = jax.random.normal(kc, (H1, C), dtype=jnp.float32) * (1.0 / jnp.sqrt(H1))
    bc = jnp.zeros((1, C), dtype=jnp.float32)

    ref = reference_forward(x, adj, w0, w1, wc, bc)

    # 1) f32 compute path: tight check against the f32 reference.
    out_f32 = gnn_forward(x, adj, w0, w1, wc, bc,
                          compute_dtype=jnp.float32)
    out_f32 = jax.block_until_ready(out_f32)
    assert out_f32.shape == (bs, C), out_f32.shape
    assert jnp.allclose(out_f32, ref, atol=1e-4, rtol=1e-4), (out_f32, ref)

    # 2) bf16 compute path (the optimized configuration): looser tolerance
    #    for the bf16 MXU inputs (f32 accumulation).
    out_bf16 = gnn_forward(x, adj, w0, w1, wc, bc,
                           compute_dtype=jnp.bfloat16)
    out_bf16 = jax.block_until_ready(out_bf16)
    assert out_bf16.shape == (bs, C), out_bf16.shape
    assert jnp.allclose(out_bf16, ref, atol=5e-2, rtol=5e-2), (out_bf16, ref)

    print("KERNEL_OK")
</pallas_src>

<mosaic_0001>
module attributes {stable_mosaic.version = 11 : i64} {
  func.func @gnn_kernel(%arg0: i32, %arg1: memref<8x16x4xf32, #tpu.memory_space<vmem>>, %arg2: memref<8x16x16xf32, #tpu.memory_space<vmem>>, %arg3: memref<4x32xf32, #tpu.memory_space<vmem>>, %arg4: memref<32x32xf32, #tpu.memory_space<vmem>>, %arg5: memref<8x32xf32, #tpu.memory_space<vmem>>) attributes {dimension_semantics = [#tpu.dimension_semantics<parallel>], iteration_bounds = array<i64: 2>, scalar_prefetch = 0 : i64, scratch_operands = 0 : i64, tpu.core_type = #tpu.core_type<tc>, window_params = [{transform_indices = @transform_0, window_bounds = array<i64: 8, 16, 4>}, {transform_indices = @transform_1, window_bounds = array<i64: 8, 16, 16>}, {pipeline_mode = #tpu.pipeline_mode<synchronous>, transform_indices = @transform_2, window_bounds = array<i64: 4, 32>}, {pipeline_mode = #tpu.pipeline_mode<synchronous>, transform_indices = @transform_3, window_bounds = array<i64: 32, 32>}, {transform_indices = @transform_4, window_bounds = array<i64: 8, 32>}]} {
    %c0 = arith.constant 0 : index
    %c0_0 = arith.constant 0 : index
    %c0_1 = arith.constant 0 : index
    %0 = vector.load %arg2[%c0, %c0_0, %c0_1] : memref<8x16x16xf32, #tpu.memory_space<vmem>>, vector<8x16x16xf32>
    %c0_2 = arith.constant 0 : index
    %c0_3 = arith.constant 0 : index
    %c0_4 = arith.constant 0 : index
    %1 = vector.load %arg1[%c0_2, %c0_3, %c0_4] : memref<8x16x4xf32, #tpu.memory_space<vmem>>, vector<8x16x4xf32>
    "tpu.trace_start"() <{level = 10 : i32, message = "bnm,bmd->bnd"}> : () -> ()
    %cst = arith.constant dense<0.000000e+00> : vector<8x16x4xf32>
    %2 = tpu.matmul %0, %1, %cst {dimension_numbers = #tpu.dot_dimension_numbers<[2], [1], [1], [2], [0, 0, 0, 1, 1, 2], [0], [0]>} : vector<8x16x16xf32>, vector<8x16x4xf32>, vector<8x16x4xf32> -> vector<8x16x4xf32>
    "tpu.trace_stop"() : () -> ()
    %3 = vector.shape_cast %2 : vector<8x16x4xf32> to vector<128x4xf32>
    %c0_5 = arith.constant 0 : index
    %c0_6 = arith.constant 0 : index
    %4 = vector.load %arg3[%c0_5, %c0_6] : memref<4x32xf32, #tpu.memory_space<vmem>>, vector<4x32xf32>
    %cst_7 = arith.constant dense<0.000000e+00> : vector<128x32xf32>
    %5 = tpu.matmul %3, %4, %cst_7 {dimension_numbers = #tpu.dot_dimension_numbers<[1], [0], [0], [1], [0, 0, 1, 1], [], []>} : vector<128x4xf32>, vector<4x32xf32>, vector<128x32xf32> -> vector<128x32xf32>
    %cst_8 = arith.constant 0.000000e+00 : f32
    %6 = vector.broadcast %cst_8 : f32 to vector<128x32xf32>
    %7 = arith.maximumf %5, %6 : vector<128x32xf32>
    %8 = vector.shape_cast %7 : vector<128x32xf32> to vector<8x16x32xf32>
    "tpu.trace_start"() <{level = 10 : i32, message = "bnm,bmd->bnd"}> : () -> ()
    %cst_9 = arith.constant dense<0.000000e+00> : vector<8x16x32xf32>
    %9 = tpu.matmul %0, %8, %cst_9 {dimension_numbers = #tpu.dot_dimension_numbers<[2], [1], [1], [2], [0, 0, 0, 1, 1, 2], [0], [0]>} : vector<8x16x16xf32>, vector<8x16x32xf32>, vector<8x16x32xf32> -> vector<8x16x32xf32>
    "tpu.trace_stop"() : () -> ()
    %10 = vector.shape_cast %9 : vector<8x16x32xf32> to vector<128x32xf32>
    %c0_10 = arith.constant 0 : index
    %c0_11 = arith.constant 0 : index
    %11 = vector.load %arg4[%c0_10, %c0_11] : memref<32x32xf32, #tpu.memory_space<vmem>>, vector<32x32xf32>
    %cst_12 = arith.constant dense<0.000000e+00> : vector<128x32xf32>
    %12 = tpu.matmul %10, %11, %cst_12 {dimension_numbers = #tpu.dot_dimension_numbers<[1], [0], [0], [1], [0, 0, 1, 1], [], []>} : vector<128x32xf32>, vector<32x32xf32>, vector<128x32xf32> -> vector<128x32xf32>
    %cst_13 = arith.constant 0.000000e+00 : f32
    %13 = vector.broadcast %cst_13 : f32 to vector<128x32xf32>
    %14 = arith.maximumf %12, %13 : vector<128x32xf32>
    %15 = vector.shape_cast %14 : vector<128x32xf32> to vector<8x16x32xf32>
    %cst_14 = arith.constant dense<0xFF800000> : vector<8x32xf32>
    %16 = vector.multi_reduction <maximumf>, %15, %cst_14 [1] : vector<8x16x32xf32> to vector<8x32xf32>
    %c0_15 = arith.constant 0 : index
    %c0_16 = arith.constant 0 : index
    %17 = vector.load %arg5[%c0_15, %c0_16] : memref<8x32xf32, #tpu.memory_space<vmem>>, vector<8x32xf32>
    tpu.vector_store %arg5[%c0_15, %c0_16], %16 {strides = array<i32>} : memref<8x32xf32, #tpu.memory_space<vmem>>, vector<8x32xf32>,
    return
  }
  func.func @transform_0(%arg0: i32) -> (i32, i32, i32) {
    %c0_i32 = arith.constant 0 : i32
    %c0_i32_0 = arith.constant 0 : i32
    %c0_i32_1 = arith.constant 0 : i32
    return %arg0, %c0_i32, %c0_i32_0 : i32, i32, i32
  }
  func.func @transform_1(%arg0: i32) -> (i32, i32, i32) {
    %c0_i32 = arith.constant 0 : i32
    %c0_i32_0 = arith.constant 0 : i32
    %c0_i32_1 = arith.constant 0 : i32
    return %arg0, %c0_i32, %c0_i32_0 : i32, i32, i32
  }
  func.func @transform_2(%arg0: i32) -> (i32, i32) {
    %c0_i32 = arith.constant 0 : i32
    %c0_i32_0 = arith.constant 0 : i32
    %c0_i32_1 = arith.constant 0 : i32
    return %c0_i32, %c0_i32_0 : i32, i32
  }
  func.func @transform_3(%arg0: i32) -> (i32, i32) {
    %c0_i32 = arith.constant 0 : i32
    %c0_i32_0 = arith.constant 0 : i32
    %c0_i32_1 = arith.constant 0 : i32
    return %c0_i32, %c0_i32_0 : i32, i32
  }
  func.func @transform_4(%arg0: i32) -> (i32, i32) {
    %c0_i32 = arith.constant 0 : i32
    %c0_i32_0 = arith.constant 0 : i32
    return %arg0, %c0_i32 : i32, i32
  }
}

</mosaic_0001>

<llo_original>
// kernel: tpu_custom_call.1
$region0: #{tpu_custom_call.1}
  #allocation0 [shape = 'u32[]', space=smem, size = 0x4, offset = 0x4, fixed_abs, tag = 'smem constant byte address 0x4 - core index']
  #allocation1 [shape = 'u32[144,128]{1,0:T(1,128)}', space=vmem, size = 0x12000, scoped, tag = 'internal scratch']
  %s0 = inlined_call_operand.vmem [shape: f32[16,16,4], index: 0, kind: input, shape index: {}]
  %s1 = inlined_call_operand.vmem [shape: f32[16,16,16], index: 1, kind: input, shape index: {}]
  %s2 = inlined_call_operand.vmem [shape: f32[4,32], index: 2, kind: input, shape index: {}]
  %s3 = inlined_call_operand.vmem [shape: f32[32,32], index: 3, kind: input, shape index: {}]
  %s4 = inlined_call_operand.hbm [shape: f32[16,32], index: 4, kind: output, shape index: {}]
  %s5 = sld [smem:[#allocation0]]
  $region49: #{tpu_custom_call.1} parent=0
    _
  %s7 = ssub.s32 1, %s5
  %s8 = scalar_select 0, %s7, %s5
  $region1: #{tpu_custom_call.1} parent=0
    #allocation2 [shape = 'u8[8192]{0}', space=vmem, size = 0x2000, scoped, tag = 'output window, operand 0']
    #allocation3 [shape = 's32[2]{0}', space=sflag, size = 0x8, scoped, tag = 'scoped memory for tpu_custom_call.1']
    %9 = vsyncpa [#allocation3], 0
    %s10 = scalar_lea.sflag [#allocation3], 1
    %11 = vsyncpa %s10, 0
    loop: start=0, step=1, limit=4
    $region2: #{tpu_custom_call.1} parent=1 // loop_pre_header
      _
    $region3: #{tpu_custom_call.1} parent=1 // loop_header
      %s13 = sphi 0, %s17
      %p14 = scmp.ge.s32.totalorder %s13, 4
      %s23 = sphi 0, %s25
      %s26 = sphi 0, %s23
      %s27 = sphi 0, %s26
      %s43 = sphi 0, %s27
      %s49 = sphi 0, %s51
      %s52 = sphi 0, %s49
      %s53 = sphi 0, %s52
      %s69 = sphi 0, %s53
      %s73 = sphi 0, %s73
      %s75 = sphi 0, %s73
      %s76 = sphi 0, %s75
      %s90 = sphi 0, %s76
      %s94 = sphi 0, %s94
      %s96 = sphi 0, %s94
      %s97 = sphi 0, %s96
      %s111 = sphi 0, %s97
      %s117 = sphi 0, %s119
      %s120 = sphi 0, %s117
      %s121 = sphi 0, %s120
      %s137 = sphi 0, %s121
    $region4: #{tpu_custom_call.1} parent=1 // loop_header_branch
      %16 = sbr.rel (%p14) target = $region8
    $region5: #{tpu_custom_call.1} parent=1 // loop_body
      %s18 = ssub.s32 %s13, 1
      %s19 = ssub.s32 %s13, 2
      %s20 = sadd.s32 %s13, 1
      %s21 = ssub.s32 %s13, %s20
      %p22 = scmp.eq.s32.totalorder %s21, 0
      %s24 = sadd.s32 %s23, 1
      %s25 = scalar_select %p22, %s23, %s24
      %p28 = pneg %p22
      %p29 = scmp.eq.s32.totalorder %s13, 1
      %p30 = por %p28, %p29
      %p31 = scmp.ne.s32.totalorder %s23, %s26
      %p32 = scmp.eq.s32.totalorder %s13, 0
      %p33 = por %p31, %p32
      %p34 = scmp.ne.s32.totalorder %s23, %s26
      %p35 = scmp.eq.s32.totalorder %s18, 1
      %p36 = por %p34, %p35
      %p37 = scmp.ne.s32.totalorder %s26, %s27
      %p38 = scmp.eq.s32.totalorder %s18, 0
      %p39 = por %p37, %p38
      %p40 = scmp.ne.s32.totalorder %s26, %s27
      %p41 = scmp.eq.s32.totalorder %s19, 1
      %p42 = por %p40, %p41
      %p44 = scmp.ne.s32.totalorder %s27, %s43
      %p45 = scmp.eq.s32.totalorder %s19, 0
      %p46 = por %p44, %p45
      %s47 = ssub.s32 %s13, %s20
      %p48 = scmp.eq.s32.totalorder %s47, 0
      %s50 = sadd.s32 %s49, 1
      %s51 = scalar_select %p48, %s49, %s50
      %p54 = pneg %p48
      %p55 = scmp.eq.s32.totalorder %s13, 1
      %p56 = por %p54, %p55
      %p57 = scmp.ne.s32.totalorder %s49, %s52
      %p58 = scmp.eq.s32.totalorder %s13, 0
      %p59 = por %p57, %p58
      %p60 = scmp.ne.s32.totalorder %s49, %s52
      %p61 = scmp.eq.s32.totalorder %s18, 1
      %p62 = por %p60, %p61
      %p63 = scmp.ne.s32.totalorder %s52, %s53
      %p64 = scmp.eq.s32.totalorder %s18, 0
      %p65 = por %p63, %p64
      %p66 = scmp.ne.s32.totalorder %s52, %s53
      %p67 = scmp.eq.s32.totalorder %s19, 1
      %p68 = por %p66, %p67
      %p70 = scmp.ne.s32.totalorder %s53, %s69
      %p71 = scmp.eq.s32.totalorder %s19, 0
      %p72 = por %p70, %p71
      %s74 = sadd.s32 %s73, 1
      %p77 = scmp.eq.s32.totalorder %s13, 1
      %p78 = scmp.ne.s32.totalorder %s73, %s75
      %p79 = scmp.eq.s32.totalorder %s13, 0
      %p80 = por %p78, %p79
      %p81 = scmp.ne.s32.totalorder %s73, %s75
      %p82 = scmp.eq.s32.totalorder %s18, 1
      %p83 = por %p81, %p82
      %p84 = scmp.ne.s32.totalorder %s75, %s76
      %p85 = scmp.eq.s32.totalorder %s18, 0
      %p86 = por %p84, %p85
      %p87 = scmp.ne.s32.totalorder %s75, %s76
      %p88 = scmp.eq.s32.totalorder %s19, 1
      %p89 = por %p87, %p88
      %p91 = scmp.ne.s32.totalorder %s76, %s90
      %p92 = scmp.eq.s32.totalorder %s19, 0
      %p93 = por %p91, %p92
      %s95 = sadd.s32 %s94, 1
      %p98 = scmp.eq.s32.totalorder %s13, 1
      %p99 = scmp.ne.s32.totalorder %s94, %s96
      %p100 = scmp.eq.s32.totalorder %s13, 0
      %p101 = por %p99, %p100
      %p102 = scmp.ne.s32.totalorder %s94, %s96
      %p103 = scmp.eq.s32.totalorder %s18, 1
      %p104 = por %p102, %p103
      %p105 = scmp.ne.s32.totalorder %s96, %s97
      %p106 = scmp.eq.s32.totalorder %s18, 0
      %p107 = por %p105, %p106
      %p108 = scmp.ne.s32.totalorder %s96, %s97
      %p109 = scmp.eq.s32.totalorder %s19, 1
      %p110 = por %p108, %p109
      %p112 = scmp.ne.s32.totalorder %s97, %s111
      %p113 = scmp.eq.s32.totalorder %s19, 0
      %p114 = por %p112, %p113
      %s115 = ssub.s32 %s13, %s20
      %p116 = scmp.eq.s32.totalorder %s115, 0
      %s118 = sadd.s32 %s117, 1
      %s119 = scalar_select %p116, %s117, %s118
      %p122 = pneg %p116
      %p123 = scmp.eq.s32.totalorder %s13, 1
      %p124 = por %p122, %p123
      %p125 = scmp.ne.s32.totalorder %s117, %s120
      %p126 = scmp.eq.s32.totalorder %s13, 0
      %p127 = por %p125, %p126
      %p128 = scmp.ne.s32.totalorder %s117, %s120
      %p129 = scmp.eq.s32.totalorder %s18, 1
      %p130 = por %p128, %p129
      %p131 = scmp.ne.s32.totalorder %s120, %s121
      %p132 = scmp.eq.s32.totalorder %s18, 0
      %p133 = por %p131, %p132
      %p134 = scmp.ne.s32.totalorder %s120, %s121
      %p135 = scmp.eq.s32.totalorder %s19, 1
      %p136 = por %p134, %p135
      %p138 = scmp.ne.s32.totalorder %s121, %s137
      %p139 = scmp.eq.s32.totalorder %s19, 0
      %p140 = por %p138, %p139
      %p141 = scmp.le.s32.totalorder 1, %s13
      %p142 = scmp.lt.s32.totalorder %s13, 3
      %p143 = pnand %p141, %p142
      %p144 = pneg %p143
      // Predicated region
      $region9: #{tpu_custom_call.1} parent=5 // pred_check
        _
      $region10: #{tpu_custom_call.1} parent=5 // pred_check_branch
        %146 = sbr.rel (%p143) target = $region12
      $region11: #{tpu_custom_call.1} parent=5 // pred_region
        %s147 = ssub.s32 %s13, 1
        // Predicated region
        $region13: #{tpu_custom_call.1} parent=11 // pred_check
          %p148 = pneg %p86
        $region14: #{tpu_custom_call.1} parent=11 // pred_check_branch
          %150 = sbr.rel (%p148) target = $region16
        $region15: #{tpu_custom_call.1} parent=11 // pred_region
          _
        $region16: #{tpu_custom_call.1} parent=11 // pred_fallthru
          _
        // Predicated region
        $region17: #{tpu_custom_call.1} parent=11 // pred_check
          %p151 = pneg %p107
        $region18: #{tpu_custom_call.1} parent=11 // pred_check_branch
          %153 = sbr.rel (%p151) target = $region20
        $region19: #{tpu_custom_call.1} parent=11 // pred_region
          _
        $region20: #{tpu_custom_call.1} parent=11 // pred_fallthru
          _
      $region12: #{tpu_custom_call.1} parent=5 // pred_fallthru
        _
      %p154 = scmp.lt.s32.totalorder %s13, 2
      // Predicated region
      $region21: #{tpu_custom_call.1} parent=5 // pred_check
        %p155 = pneg %p154
      $region22: #{tpu_custom_call.1} parent=5 // pred_check_branch
        %157 = sbr.rel (%p155) target = $region24
      $region23: #{tpu_custom_call.1} parent=5 // pred_region
        // Predicated region
        $region25: #{tpu_custom_call.1} parent=23 // pred_check
          %p158 = pneg %p33
        $region26: #{tpu_custom_call.1} parent=23 // pred_check_branch
          %160 = sbr.rel (%p158) target = $region28
        $region27: #{tpu_custom_call.1} parent=23 // pred_region
          %s161 = smul.u32 8, %s13
          %p162 = scmp.lt.s32.totalorder %s161, 15
          %s163 = scalar_select %p162, %s161, 15
          %s164 = smul.addr %s163, 2
          %s165 = smul.addr %s164, 8
          %s166 = scalar_lea.vmem %s0, %s165
          %s167 = smul.u32 8, %s13
        $region28: #{tpu_custom_call.1} parent=23 // pred_fallthru
          _
        // Predicated region
        $region29: #{tpu_custom_call.1} parent=23 // pred_check
          %p168 = pneg %p59
        $region30: #{tpu_custom_call.1} parent=23 // pred_check_branch
          %170 = sbr.rel (%p168) target = $region32
        $region31: #{tpu_custom_call.1} parent=23 // pred_region
          %s171 = smul.u32 8, %s13
          %p172 = scmp.lt.s32.totalorder %s171, 15
          %s173 = scalar_select %p172, %s171, 15
          %s174 = smul.addr %s173, 2
          %s175 = smul.addr %s174, 8
          %s176 = scalar_lea.vmem %s1, %s175
          %s177 = smul.u32 8, %s13
        $region32: #{tpu_custom_call.1} parent=23 // pred_fallthru
          _
      $region24: #{tpu_custom_call.1} parent=5 // pred_fallthru
        _
      %p178 = scmp.le.s32.totalorder 1, %s13
      %p179 = scmp.lt.s32.totalorder %s13, 3
      %p180 = pnand %p178, %p179
      %p181 = pneg %p180
      // Predicated region
      $region33: #{tpu_custom_call.1} parent=5 // pred_check
        _
      $region34: #{tpu_custom_call.1} parent=5 // pred_check_branch
        %183 = sbr.rel (%p180) target = $region36
      $region35: #{tpu_custom_call.1} parent=5 // pred_region
        %s184 = ssub.s32 %s13, 1
        %s185 = smul.u32 8, %s18
        %p186 = scmp.lt.s32.totalorder %s185, 15
        %s187 = scalar_select %p186, %s185, 15
        %s188 = smul.addr %s187, 2
        %s189 = smul.addr %s188, 8
        %s190 = scalar_lea.vmem %s0, %s189
        %p191 = pneg %p39
        %p192 = pneg %p36
        %s193 = smul.u32 8, %s18
        %p194 = scmp.lt.s32.totalorder %s193, 15
        %s195 = scalar_select %p194, %s193, 15
        %s196 = smul.addr %s195, 2
        %s197 = smul.addr %s196, 8
        %s198 = scalar_lea.vmem %s1, %s197
        %p199 = pneg %p65
        %p200 = pneg %p62
        %p201 = pneg %p86
        %p202 = pneg %p83
        %p203 = pneg %p107
        %p204 = pneg %p104
        %p205 = pneg %p133
        %p206 = pneg %p130
        %s207 = sand.u32 %s120, 1
        %s208 = scalar_lea.sflag [#allocation3], %s207
        %s209 = sand.u32 %s120, 1
        %s210 = smul.addr %s209, 8
        %s211 = scalar_lea.vmem [#allocation2], %s210
        %s212 = smul.u32 8, %s18
        %p213 = scmp.lt.s32.totalorder %s212, 15
        %s214 = scalar_select %p213, %s212, 15
        %s215 = smul.addr %s214, 2
        %s216 = smul.addr %s215, 8
        %s217 = scalar_lea.vmem %s0, %s216
        %s218 = smul.u32 8, %s18
        %s219 = smul.u32 8, %s18
        %p220 = scmp.lt.s32.totalorder %s219, 15
        %s221 = scalar_select %p220, %s219, 15
        %s222 = smul.addr %s221, 2
        %s223 = smul.addr %s222, 8
        %s224 = scalar_lea.vmem %s1, %s223
        %s225 = smul.u32 8, %s18
        %v226 = vld [vmem:[%s224] sm:$0xff]
        %v227 = vld [vmem:[%s224 + $0x8] sm:$0xff]
        %v228 = vld [vmem:[%s224 + $0x10] sm:$0xff]
        %v229 = vld [vmem:[%s224 + $0x18] sm:$0xff]
        %v230 = vld [vmem:[%s224 + $0x20] sm:$0xff]
        %v231 = vld [vmem:[%s224 + $0x28] sm:$0xff]
        %v232 = vld [vmem:[%s224 + $0x30] sm:$0xff]
        %v233 = vld [vmem:[%s224 + $0x38] sm:$0xff]
        %v234 = vld [vmem:[%s224 + $0x40] sm:$0xff]
        %v235 = vld [vmem:[%s224 + $0x48] sm:$0xff]
        %v236 = vld [vmem:[%s224 + $0x50] sm:$0xff]
        %v237 = vld [vmem:[%s224 + $0x58] sm:$0xff]
        %v238 = vld [vmem:[%s224 + $0x60] sm:$0xff]
        %v239 = vld [vmem:[%s224 + $0x68] sm:$0xff]
        %v240 = vld [vmem:[%s224 + $0x70] sm:$0xff]
        %v241 = vld [vmem:[%s224 + $0x78] sm:$0xff]
        %v242 = vld [vmem:[%s217] sm:$0xff]
        %v243 = vld [vmem:[%s217 + $0x8] sm:$0xff]
        %v244 = vld [vmem:[%s217 + $0x10] sm:$0xff]
        %v245 = vld [vmem:[%s217 + $0x18] sm:$0xff]
        %v246 = vld [vmem:[%s217 + $0x20] sm:$0xff]
        %v247 = vld [vmem:[%s217 + $0x28] sm:$0xff]
        %v248 = vld [vmem:[%s217 + $0x30] sm:$0xff]
        %v249 = vld [vmem:[%s217 + $0x38] sm:$0xff]
        %v250 = vld [vmem:[%s217 + $0x40] sm:$0xff]
        %v251 = vld [vmem:[%s217 + $0x48] sm:$0xff]
        %v252 = vld [vmem:[%s217 + $0x50] sm:$0xff]
        %v253 = vld [vmem:[%s217 + $0x58] sm:$0xff]
        %v254 = vld [vmem:[%s217 + $0x60] sm:$0xff]
        %v255 = vld [vmem:[%s217 + $0x68] sm:$0xff]
        %v256 = vld [vmem:[%s217 + $0x70] sm:$0xff]
        %v257 = vld [vmem:[%s217 + $0x78] sm:$0xff]
        %vm258 = vcmask 130048
        %v260 = vsel %vm258, %v226, 0
        %v263 = vsel %vm258, %v227, 0
        %265 = vmatprep.subr.mxu0 0.0
        %266 = vmatpush1.msra.mxu0 %v242
        %267 = vmatprep.subr.mxu0 0.0
        %268 = vmatpush1.msra.mxu0 %v243
        %269 = vmatprep.subr.mxu0 0.0
        %270 = vmatpush1.msra.mxu0 0.0
        %271 = vmatprep.subr.mxu0 0.0
        %272 = vmatpush1.msra.mxu0 0.0
        %273 = vmatprep.subr.mxu0 0.0
        %274 = vmatpush1.msra.mxu0 0.0
        %275 = vmatprep.subr.mxu0 0.0
        %276 = vmatpush1.msra.mxu0 0.0
        %277 = vmatprep.subr.mxu0 0.0
        %278 = vmatpush1.msra.mxu0 0.0
        %279 = vmatprep.subr.mxu0 0.0
        %280 = vmatpush1.msra.mxu0 0.0
        %281 = vmatprep.subr.mxu0 0.0
        %282 = vmatpush1.msra.mxu0 0.0
        %283 = vmatprep.subr.mxu0 0.0
        %284 = vmatpush1.msra.mxu0 0.0
        %285 = vmatprep.subr.mxu0 0.0
        %286 = vmatpush1.msra.mxu0 0.0
        %287 = vmatprep.subr.mxu0 0.0
        %288 = vmatpush1.msra.mxu0 0.0
        %289 = vmatprep.subr.mxu0 0.0
        %290 = vmatpush1.msra.mxu0 0.0
        %291 = vmatprep.subr.mxu0 0.0
        %292 = vmatpush1.msra.mxu0 0.0
        %293 = vmatprep.subr.mxu0 0.0
        %294 = vmatpush1.msra.mxu0 0.0
        %295 = vmatprep.subr.mxu0 0.0
        %296 = vmatpush1.msra.mxu0 0.0
        %297 = vmatprep.subr.mxu0 0.0
        %298 = vmatpush1.msra.mxu0 0.0
        %299 = vmatprep.subr.mxu0 0.0
        %300 = vmatpush1.msra.mxu0 0.0
        %301 = vmatprep.subr.mxu0 0.0
        %302 = vmatpush1.msra.mxu0 0.0
        %303 = vmatprep.subr.mxu0 0.0
        %304 = vmatpush1.msra.mxu0 0.0
        %305 = vmatprep.subr.mxu0 0.0
        %306 = vmatpush1.msra.mxu0 0.0
        %307 = vmatprep.subr.mxu0 0.0
        %308 = vmatpush1.msra.mxu0 0.0
        %309 = vmatprep.subr.mxu0 0.0
        %310 = vmatpush1.msra.mxu0 0.0
        %311 = vmatprep.subr.mxu0 0.0
        %312 = vmatpush1.msra.mxu0 0.0
        %313 = vmatprep.subr.mxu0 0.0
        %314 = vmatpush1.msra.mxu0 0.0
        %315 = vmatprep.subr.mxu0 0.0
        %316 = vmatpush1.msra.mxu0 0.0
        %317 = vmatprep.subr.mxu0 0.0
        %318 = vmatpush1.msra.mxu0 0.0
        %319 = vmatprep.subr.mxu0 0.0
        %320 = vmatpush1.msra.mxu0 0.0
        %321 = vmatprep.subr.mxu0 0.0
        %322 = vmatpush1.msra.mxu0 0.0
        %323 = vmatprep.subr.mxu0 0.0
        %324 = vmatpush1.msra.mxu0 0.0
        %325 = vmatprep.subr.mxu0 0.0
        %326 = vmatpush1.msra.mxu0 0.0
        %327 = vmatprep.subr.mxu0 0.0
        %328 = vmatpush1.msra.mxu0 0.0
        %329 = vmatprep.mubr.f32.mxu0 0.0
        %330 = vmatmul.mubr.f32.gmra.mrb[0].mxu0 %v260
        %v331 = vpop.f32.mrb[0].mxu0
        %v332 = vadd.f32 0.0, %v331
        %v333 = vpop.f32.mrb[0].mxu0
        %334 = vmatprep.mubr.f32.mxu0 0.0
        %335 = vmatmul.mubr.f32.gmra.mrb[0].mxu0 %v263
        %v336 = vpop.f32.mrb[0].mxu0
        %v337 = vadd.f32 0.0, %v336
        %v338 = vpop.f32.mrb[0].mxu0
        %339 = vdwg.mxu0
        %v341 = vsel %vm258, %v228, 0
        %v344 = vsel %vm258, %v229, 0
        %346 = vmatprep.subr.mxu0 0.0
        %347 = vmatpush1.msra.mxu0 %v244
        %348 = vmatprep.subr.mxu0 0.0
        %349 = vmatpush1.msra.mxu0 %v245
        %350 = vmatprep.subr.mxu0 0.0
        %351 = vmatpush1.msra.mxu0 0.0
        %352 = vmatprep.subr.mxu0 0.0
        %353 = vmatpush1.msra.mxu0 0.0
        %354 = vmatprep.subr.mxu0 0.0
        %355 = vmatpush1.msra.mxu0 0.0
        %356 = vmatprep.subr.mxu0 0.0
        %357 = vmatpush1.msra.mxu0 0.0
        %358 = vmatprep.subr.mxu0 0.0
        %359 = vmatpush1.msra.mxu0 0.0
        %360 = vmatprep.subr.mxu0 0.0
        %361 = vmatpush1.msra.mxu0 0.0
        %362 = vmatprep.subr.mxu0 0.0
        %363 = vmatpush1.msra.mxu0 0.0
        %364 = vmatprep.subr.mxu0 0.0
        %365 = vmatpush1.msra.mxu0 0.0
        %366 = vmatprep.subr.mxu0 0.0
        %367 = vmatpush1.msra.mxu0 0.0
        %368 = vmatprep.subr.mxu0 0.0
        %369 = vmatpush1.msra.mxu0 0.0
        %370 = vmatprep.subr.mxu0 0.0
        %371 = vmatpush1.msra.mxu0 0.0
        %372 = vmatprep.subr.mxu0 0.0
        %373 = vmatpush1.msra.mxu0 0.0
        %374 = vmatprep.subr.mxu0 0.0
        %375 = vmatpush1.msra.mxu0 0.0
        %376 = vmatprep.subr.mxu0 0.0
        %377 = vmatpush1.msra.mxu0 0.0
        %378 = vmatprep.subr.mxu0 0.0
        %379 = vmatpush1.msra.mxu0 0.0
        %380 = vmatprep.subr.mxu0 0.0
        %381 = vmatpush1.msra.mxu0 0.0
        %382 = vmatprep.subr.mxu0 0.0
        %383 = vmatpush1.msra.mxu0 0.0
        %384 = vmatprep.subr.mxu0 0.0
        %385 = vmatpush1.msra.mxu0 0.0
        %386 = vmatprep.subr.mxu0 0.0
        %387 = vmatpush1.msra.mxu0 0.0
        %388 = vmatprep.subr.mxu0 0.0
        %389 = vmatpush1.msra.mxu0 0.0
        %390 = vmatprep.subr.mxu0 0.0
        %391 = vmatpush1.msra.mxu0 0.0
        %392 = vmatprep.subr.mxu0 0.0
        %393 = vmatpush1.msra.mxu0 0.0
        %394 = vmatprep.subr.mxu0 0.0
        %395 = vmatpush1.msra.mxu0 0.0
        %396 = vmatprep.subr.mxu0 0.0
        %397 = vmatpush1.msra.mxu0 0.0
        %398 = vmatprep.subr.mxu0 0.0
        %399 = vmatpush1.msra.mxu0 0.0
        %400 = vmatprep.subr.mxu0 0.0
        %401 = vmatpush1.msra.mxu0 0.0
        %402 = vmatprep.subr.mxu0 0.0
        %403 = vmatpush1.msra.mxu0 0.0
        %404 = vmatprep.subr.mxu0 0.0
        %405 = vmatpush1.msra.mxu0 0.0
        %406 = vmatprep.subr.mxu0 0.0
        %407 = vmatpush1.msra.mxu0 0.0
        %408 = vmatprep.subr.mxu0 0.0
        %409 = vmatpush1.msra.mxu0 0.0
        %410 = vmatprep.mubr.f32.mxu0 0.0
        %411 = vmatmul.mubr.f32.gmra.mrb[0].mxu0 %v341
        %v412 = vpop.f32.mrb[0].mxu0
        %v413 = vadd.f32 0.0, %v412
        %v414 = vpop.f32.mrb[0].mxu0
        %415 = vmatprep.mubr.f32.mxu0 0.0
        %416 = vmatmul.mubr.f32.gmra.mrb[0].mxu0 %v344
        %v417 = vpop.f32.mrb[0].mxu0
        %v418 = vadd.f32 0.0, %v417
        %v419 = vpop.f32.mrb[0].mxu0
        %420 = vdwg.mxu0
        %v422 = vsel %vm258, %v230, 0
        %v425 = vsel %vm258, %v231, 0
        %427 = vmatprep.subr.mxu0 0.0
        %428 = vmatpush1.msra.mxu0 %v246
        %429 = vmatprep.subr.mxu0 0.0
        %430 = vmatpush1.msra.mxu0 %v247
        %431 = vmatprep.subr.mxu0 0.0
        %432 = vmatpush1.msra.mxu0 0.0
        %433 = vmatprep.subr.mxu0 0.0
        %434 = vmatpush1.msra.mxu0 0.0
        %435 = vmatprep.subr.mxu0 0.0
        %436 = vmatpush1.msra.mxu0 0.0
        %437 = vmatprep.subr.mxu0 0.0
        %438 = vmatpush1.msra.mxu0 0.0
        %439 = vmatprep.subr.mxu0 0.0
        %440 = vmatpush1.msra.mxu0 0.0
        %441 = vmatprep.subr.mxu0 0.0
        %442 = vmatpush1.msra.mxu0 0.0
        %443 = vmatprep.subr.mxu0 0.0
        %444 = vmatpush1.msra.mxu0 0.0
        %445 = vmatprep.subr.mxu0 0.0
        %446 = vmatpush1.msra.mxu0 0.0
        %447 = vmatprep.subr.mxu0 0.0
        %448 = vmatpush1.msra.mxu0 0.0
        %449 = vmatprep.subr.mxu0 0.0
        %450 = vmatpush1.msra.mxu0 0.0
        %451 = vmatprep.subr.mxu0 0.0
        %452 = vmatpush1.msra.mxu0 0.0
        %453 = vmatprep.subr.mxu0 0.0
        %454 = vmatpush1.msra.mxu0 0.0
        %455 = vmatprep.subr.mxu0 0.0
        %456 = vmatpush1.msra.mxu0 0.0
        %457 = vmatprep.subr.mxu0 0.0
        %458 = vmatpush1.msra.mxu0 0.0
        %459 = vmatprep.subr.mxu0 0.0
        %460 = vmatpush1.msra.mxu0 0.0
        %461 = vmatprep.subr.mxu0 0.0
        %462 = vmatpush1.msra.mxu0 0.0
        %463 = vmatprep.subr.mxu0 0.0
        %464 = vmatpush1.msra.mxu0 0.0
        %465 = vmatprep.subr.mxu0 0.0
        %466 = vmatpush1.msra.mxu0 0.0
        %467 = vmatprep.subr.mxu0 0.0
        %468 = vmatpush1.msra.mxu0 0.0
        %469 = vmatprep.subr.mxu0 0.0
        %470 = vmatpush1.msra.mxu0 0.0
        %471 = vmatprep.subr.mxu0 0.0
        %472 = vmatpush1.msra.mxu0 0.0
        %473 = vmatprep.subr.mxu0 0.0
        %474 = vmatpush1.msra.mxu0 0.0
        %475 = vmatprep.subr.mxu0 0.0
        %476 = vmatpush1.msra.mxu0 0.0
        %477 = vmatprep.subr.mxu0 0.0
        %478 = vmatpush1.msra.mxu0 0.0
        %479 = vmatprep.subr.mxu0 0.0
        %480 = vmatpush1.msra.mxu0 0.0
        %481 = vmatprep.subr.mxu0 0.0
        %482 = vmatpush1.msra.mxu0 0.0
        %483 = vmatprep.subr.mxu0 0.0
        %484 = vmatpush1.msra.mxu0 0.0
        %485 = vmatprep.subr.mxu0 0.0
        %486 = vmatpush1.msra.mxu0 0.0
        %487 = vmatprep.subr.mxu0 0.0
        %488 = vmatpush1.msra.mxu0 0.0
        %489 = vmatprep.subr.mxu0 0.0
        %490 = vmatpush1.msra.mxu0 0.0
        %491 = vmatprep.mubr.f32.mxu0 0.0
        %492 = vmatmul.mubr.f32.gmra.mrb[0].mxu0 %v422
        %v493 = vpop.f32.mrb[0].mxu0
        %v494 = vadd.f32 0.0, %v493
        %v495 = vpop.f32.mrb[0].mxu0
        %496 = vmatprep.mubr.f32.mxu0 0.0
        %497 = vmatmul.mubr.f32.gmra.mrb[0].mxu0 %v425
        %v498 = vpop.f32.mrb[0].mxu0
        %v499 = vadd.f32 0.0, %v498
        %v500 = vpop.f32.mrb[0].mxu0
        %501 = vdwg.mxu0
        %v503 = vsel %vm258, %v232, 0
        %v506 = vsel %vm258, %v233, 0
        %508 = vmatprep.subr.mxu0 0.0
        %509 = vmatpush1.msra.mxu0 %v248
        %510 = vmatprep.subr.mxu0 0.0
        %511 = vmatpush1.msra.mxu0 %v249
        %512 = vmatprep.subr.mxu0 0.0
        %513 = vmatpush1.msra.mxu0 0.0
        %514 = vmatprep.subr.mxu0 0.0
        %515 = vmatpush1.msra.mxu0 0.0
        %516 = vmatprep.subr.mxu0 0.0
        %517 = vmatpush1.msra.mxu0 0.0
        %518 = vmatprep.subr.mxu0 0.0
        %519 = vmatpush1.msra.mxu0 0.0
        %520 = vmatprep.subr.mxu0 0.0
        %521 = vmatpush1.msra.mxu0 0.0
        %522 = vmatprep.subr.mxu0 0.0
        %523 = vmatpush1.msra.mxu0 0.0
        %524 = vmatprep.subr.mxu0 0.0
        %525 = vmatpush1.msra.mxu0 0.0
        %526 = vmatprep.subr.mxu0 0.0
        %527 = vmatpush1.msra.mxu0 0.0
        %528 = vmatprep.subr.mxu0 0.0
        %529 = vmatpush1.msra.mxu0 0.0
        %530 = vmatprep.subr.mxu0 0.0
        %531 = vmatpush1.msra.mxu0 0.0
        %532 = vmatprep.subr.mxu0 0.0
        %533 = vmatpush1.msra.mxu0 0.0
        %534 = vmatprep.subr.mxu0 0.0
        %535 = vmatpush1.msra.mxu0 0.0
        %536 = vmatprep.subr.mxu0 0.0
        %537 = vmatpush1.msra.mxu0 0.0
        %538 = vmatprep.subr.mxu0 0.0
        %539 = vmatpush1.msra.mxu0 0.0
        %540 = vmatprep.subr.mxu0 0.0
        %541 = vmatpush1.msra.mxu0 0.0
        %542 = vmatprep.subr.mxu0 0.0
        %543 = vmatpush1.msra.mxu0 0.0
        %544 = vmatprep.subr.mxu0 0.0
        %545 = vmatpush1.msra.mxu0 0.0
        %546 = vmatprep.subr.mxu0 0.0
        %547 = vmatpush1.msra.mxu0 0.0
        %548 = vmatprep.subr.mxu0 0.0
        %549 = vmatpush1.msra.mxu0 0.0
        %550 = vmatprep.subr.mxu0 0.0
        %551 = vmatpush1.msra.mxu0 0.0
        %552 = vmatprep.subr.mxu0 0.0
        %553 = vmatpush1.msra.mxu0 0.0
        %554 = vmatprep.subr.mxu0 0.0
        %555 = vmatpush1.msra.mxu0 0.0
        %556 = vmatprep.subr.mxu0 0.0
        %557 = vmatpush1.msra.mxu0 0.0
        %558 = vmatprep.subr.mxu0 0.0
        %559 = vmatpush1.msra.mxu0 0.0
        %560 = vmatprep.subr.mxu0 0.0
        %561 = vmatpush1.msra.mxu0 0.0
        %562 = vmatprep.subr.mxu0 0.0
        %563 = vmatpush1.msra.mxu0 0.0
        %564 = vmatprep.subr.mxu0 0.0
        %565 = vmatpush1.msra.mxu0 0.0
        %566 = vmatprep.subr.mxu0 0.0
        %567 = vmatpush1.msra.mxu0 0.0
        %568 = vmatprep.subr.mxu0 0.0
        %569 = vmatpush1.msra.mxu0 0.0
        %570 = vmatprep.subr.mxu0 0.0
        %571 = vmatpush1.msra.mxu0 0.0
        %572 = vmatprep.mubr.f32.mxu0 0.0
        %573 = vmatmul.mubr.f32.gmra.mrb[0].mxu0 %v503
        %v574 = vpop.f32.mrb[0].mxu0
        %v575 = vadd.f32 0.0, %v574
        %v576 = vpop.f32.mrb[0].mxu0
        %577 = vmatprep.mubr.f32.mxu0 0.0
        %578 = vmatmul.mubr.f32.gmra.mrb[0].mxu0 %v506
        %v579 = vpop.f32.mrb[0].mxu0
        %v580 = vadd.f32 0.0, %v579
        %v581 = vpop.f32.mrb[0].mxu0
        %582 = vdwg.mxu0
        %v584 = vsel %vm258, %v234, 0
        %v587 = vsel %vm258, %v235, 0
        %589 = vmatprep.subr.mxu0 0.0
        %590 = vmatpush1.msra.mxu0 %v250
        %591 = vmatprep.subr.mxu0 0.0
        %592 = vmatpush1.msra.mxu0 %v251
        %593 = vmatprep.subr.mxu0 0.0
        %594 = vmatpush1.msra.mxu0 0.0
        %595 = vmatprep.subr.mxu0 0.0
        %596 = vmatpush1.msra.mxu0 0.0
        %597 = vmatprep.subr.mxu0 0.0
        %598 = vmatpush1.msra.mxu0 0.0
        %599 = vmatprep.subr.mxu0 0.0
        %600 = vmatpush1.msra.mxu0 0.0
        %601 = vmatprep.subr.mxu0 0.0
        %602 = vmatpush1.msra.mxu0 0.0
        %603 = vmatprep.subr.mxu0 0.0
        %604 = vmatpush1.msra.mxu0 0.0
        %605 = vmatprep.subr.mxu0 0.0
        %606 = vmatpush1.msra.mxu0 0.0
        %607 = vmatprep.subr.mxu0 0.0
        %608 = vmatpush1.msra.mxu0 0.0
        %609 = vmatprep.subr.mxu0 0.0
        %610 = vmatpush1.msra.mxu0 0.0
        %611 = vmatprep.subr.mxu0 0.0
        %612 = vmatpush1.msra.mxu0 0.0
        %613 = vmatprep.subr.mxu0 0.0
        %614 = vmatpush1.msra.mxu0 0.0
        %615 = vmatprep.subr.mxu0 0.0
        %616 = vmatpush1.msra.mxu0 0.0
        %617 = vmatprep.subr.mxu0 0.0
        %618 = vmatpush1.msra.mxu0 0.0
        %619 = vmatprep.subr.mxu0 0.0
        %620 = vmatpush1.msra.mxu0 0.0
        %621 = vmatprep.subr.mxu0 0.0
        %622 = vmatpush1.msra.mxu0 0.0
        %623 = vmatprep.subr.mxu0 0.0
        %624 = vmatpush1.msra.mxu0 0.0
        %625 = vmatprep.subr.mxu0 0.0
        %626 = vmatpush1.msra.mxu0 0.0
        %627 = vmatprep.subr.mxu0 0.0
        %628 = vmatpush1.msra.mxu0 0.0
        %629 = vmatprep.subr.mxu0 0.0
        %630 = vmatpush1.msra.mxu0 0.0
        %631 = vmatprep.subr.mxu0 0.0
        %632 = vmatpush1.msra.mxu0 0.0
        %633 = vmatprep.subr.mxu0 0.0
        %634 = vmatpush1.msra.mxu0 0.0
        %635 = vmatprep.subr.mxu0 0.0
        %636 = vmatpush1.msra.mxu0 0.0
        %637 = vmatprep.subr.mxu0 0.0
        %638 = vmatpush1.msra.mxu0 0.0
        %639 = vmatprep.subr.mxu0 0.0
        %640 = vmatpush1.msra.mxu0 0.0
        %641 = vmatprep.subr.mxu0 0.0
        %642 = vmatpush1.msra.mxu0 0.0
        %643 = vmatprep.subr.mxu0 0.0
        %644 = vmatpush1.msra.mxu0 0.0
        %645 = vmatprep.subr.mxu0 0.0
        %646 = vmatpush1.msra.mxu0 0.0
        %647 = vmatprep.subr.mxu0 0.0
        %648 = vmatpush1.msra.mxu0 0.0
        %649 = vmatprep.subr.mxu0 0.0
        %650 = vmatpush1.msra.mxu0 0.0
        %651 = vmatprep.subr.mxu0 0.0
        %652 = vmatpush1.msra.mxu0 0.0
        %653 = vmatprep.mubr.f32.mxu0 0.0
        %654 = vmatmul.mubr.f32.gmra.mrb[0].mxu0 %v584
        %v655 = vpop.f32.mrb[0].mxu0
        %v656 = vadd.f32 0.0, %v655
        %v657 = vpop.f32.mrb[0].mxu0
        %658 = vmatprep.mubr.f32.mxu0 0.0
        %659 = vmatmul.mubr.f32.gmra.mrb[0].mxu0 %v587
        %v660 = vpop.f32.mrb[0].mxu0
        %v661 = vadd.f32 0.0, %v660
        %v662 = vpop.f32.mrb[0].mxu0
        %663 = vdwg.mxu0
        %v665 = vsel %vm258, %v236, 0
        %v668 = vsel %vm258, %v237, 0
        %670 = vmatprep.subr.mxu0 0.0
        %671 = vmatpush1.msra.mxu0 %v252
        %672 = vmatprep.subr.mxu0 0.0
        %673 = vmatpush1.msra.mxu0 %v253
        %674 = vmatprep.subr.mxu0 0.0
        %675 = vmatpush1.msra.mxu0 0.0
        %676 = vmatprep.subr.mxu0 0.0
        %677 = vmatpush1.msra.mxu0 0.0
        %678 = vmatprep.subr.mxu0 0.0
        %679 = vmatpush1.msra.mxu0 0.0
        %680 = vmatprep.subr.mxu0 0.0
        %681 = vmatpush1.msra.mxu0 0.0
        %682 = vmatprep.subr.mxu0 0.0
        %683 = vmatpush1.msra.mxu0 0.0
        %684 = vmatprep.subr.mxu0 0.0
        %685 = vmatpush1.msra.mxu0 0.0
        %686 = vmatprep.subr.mxu0 0.0
        %687 = vmatpush1.msra.mxu0 0.0
        %688 = vmatprep.subr.mxu0 0.0
        %689 = vmatpush1.msra.mxu0 0.0
        %690 = vmatprep.subr.mxu0 0.0
        %691 = vmatpush1.msra.mxu0 0.0
        %692 = vmatprep.subr.mxu0 0.0
        %693 = vmatpush1.msra.mxu0 0.0
        %694 = vmatprep.subr.mxu0 0.0
        %695 = vmatpush1.msra.mxu0 0.0
        %696 = vmatprep.subr.mxu0 0.0
        %697 = vmatpush1.msra.mxu0 0.0
        %698 = vmatprep.subr.mxu0 0.0
        %699 = vmatpush1.msra.mxu0 0.0
        %700 = vmatprep.subr.mxu0 0.0
        %701 = vmatpush1.msra.mxu0 0.0
        %702 = vmatprep.subr.mxu0 0.0
        %703 = vmatpush1.msra.mxu0 0.0
        %704 = vmatprep.subr.mxu0 0.0
        %705 = vmatpush1.msra.mxu0 0.0
        %706 = vmatprep.subr.mxu0 0.0
        %707 = vmatpush1.msra.mxu0 0.0
        %708 = vmatprep.subr.mxu0 0.0
        %709 = vmatpush1.msra.mxu0 0.0
        %710 = vmatprep.subr.mxu0 0.0
        %711 = vmatpush1.msra.mxu0 0.0
        %712 = vmatprep.subr.mxu0 0.0
        %713 = vmatpush1.msra.mxu0 0.0
        %714 = vmatprep.subr.mxu0 0.0
        %715 = vmatpush1.msra.mxu0 0.0
        %716 = vmatprep.subr.mxu0 0.0
        %717 = vmatpush1.msra.mxu0 0.0
        %718 = vmatprep.subr.mxu0 0.0
        %719 = vmatpush1.msra.mxu0 0.0
        %720 = vmatprep.subr.mxu0 0.0
        %721 = vmatpush1.msra.mxu0 0.0
        %722 = vmatprep.subr.mxu0 0.0
        %723 = vmatpush1.msra.mxu0 0.0
        %724 = vmatprep.subr.mxu0 0.0
        %725 = vmatpush1.msra.mxu0 0.0
        %726 = vmatprep.subr.mxu0 0.0
        %727 = vmatpush1.msra.mxu0 0.0
        %728 = vmatprep.subr.mxu0 0.0
        %729 = vmatpush1.msra.mxu0 0.0
        %730 = vmatprep.subr.mxu0 0.0
        %731 = vmatpush1.msra.mxu0 0.0
        %732 = vmatprep.subr.mxu0 0.0
        %733 = vmatpush1.msra.mxu0 0.0
        %734 = vmatprep.mubr.f32.mxu0 0.0
        %735 = vmatmul.mubr.f32.gmra.mrb[0].mxu0 %v665
        %v736 = vpop.f32.mrb[0].mxu0
        %v737 = vadd.f32 0.0, %v736
        %v738 = vpop.f32.mrb[0].mxu0
        %739 = vmatprep.mubr.f32.mxu0 0.0
        %740 = vmatmul.mubr.f32.gmra.mrb[0].mxu0 %v668
        %v741 = vpop.f32.mrb[0].mxu0
        %v742 = vadd.f32 0.0, %v741
        %v743 = vpop.f32.mrb[0].mxu0
        %744 = vdwg.mxu0
        %v746 = vsel %vm258, %v238, 0
        %v749 = vsel %vm258, %v239, 0
        %751 = vmatprep.subr.mxu0 0.0
        %752 = vmatpush1.msra.mxu0 %v254
        %753 = vmatprep.subr.mxu0 0.0
        %754 = vmatpush1.msra.mxu0 %v255
        %755 = vmatprep.subr.mxu0 0.0
        %756 = vmatpush1.msra.mxu0 0.0
        %757 = vmatprep.subr.mxu0 0.0
        %758 = vmatpush1.msra.mxu0 0.0
        %759 = vmatprep.subr.mxu0 0.0
        %760 = vmatpush1.msra.mxu0 0.0
        %761 = vmatprep.subr.mxu0 0.0
        %762 = vmatpush1.msra.mxu0 0.0
        %763 = vmatprep.subr.mxu0 0.0
        %764 = vmatpush1.msra.mxu0 0.0
        %765 = vmatprep.subr.mxu0 0.0
        %766 = vmatpush1.msra.mxu0 0.0
        %767 = vmatprep.subr.mxu0 0.0
        %768 = vmatpush1.msra.mxu0 0.0
        %769 = vmatprep.subr.mxu0 0.0
        %770 = vmatpush1.msra.mxu0 0.0
        %771 = vmatprep.subr.mxu0 0.0
        %772 = vmatpush1.msra.mxu0 0.0
        %773 = vmatprep.subr.mxu0 0.0
        %774 = vmatpush1.msra.mxu0 0.0
        %775 = vmatprep.subr.mxu0 0.0
        %776 = vmatpush1.msra.mxu0 0.0
        %777 = vmatprep.subr.mxu0 0.0
        %778 = vmatpush1.msra.mxu0 0.0
        %779 = vmatprep.subr.mxu0 0.0
        %780 = vmatpush1.msra.mxu0 0.0
        %781 = vmatprep.subr.mxu0 0.0
        %782 = vmatpush1.msra.mxu0 0.0
        %783 = vmatprep.subr.mxu0 0.0
        %784 = vmatpush1.msra.mxu0 0.0
        %785 = vmatprep.subr.mxu0 0.0
        %786 = vmatpush1.msra.mxu0 0.0
        %787 = vmatprep.subr.mxu0 0.0
        %788 = vmatpush1.msra.mxu0 0.0
        %789 = vmatprep.subr.mxu0 0.0
        %790 = vmatpush1.msra.mxu0 0.0
        %791 = vmatprep.subr.mxu0 0.0
        %792 = vmatpush1.msra.mxu0 0.0
        %793 = vmatprep.subr.mxu0 0.0
        %794 = vmatpush1.msra.mxu0 0.0
        %795 = vmatprep.subr.mxu0 0.0
        %796 = vmatpush1.msra.mxu0 0.0
        %797 = vmatprep.subr.mxu0 0.0
        %798 = vmatpush1.msra.mxu0 0.0
        %799 = vmatprep.subr.mxu0 0.0
        %800 = vmatpush1.msra.mxu0 0.0
        %801 = vmatprep.subr.mxu0 0.0
        %802 = vmatpush1.msra.mxu0 0.0
        %803 = vmatprep.subr.mxu0 0.0
        %804 = vmatpush1.msra.mxu0 0.0
        %805 = vmatprep.subr.mxu0 0.0
        %806 = vmatpush1.msra.mxu0 0.0
        %807 = vmatprep.subr.mxu0 0.0
        %808 = vmatpush1.msra.mxu0 0.0
        %809 = vmatprep.subr.mxu0 0.0
        %810 = vmatpush1.msra.mxu0 0.0
        %811 = vmatprep.subr.mxu0 0.0
        %812 = vmatpush1.msra.mxu0 0.0
        %813 = vmatprep.subr.mxu0 0.0
        %814 = vmatpush1.msra.mxu0 0.0
        %815 = vmatprep.mubr.f32.mxu0 0.0
        %816 = vmatmul.mubr.f32.gmra.mrb[0].mxu0 %v746
        %v817 = vpop.f32.mrb[0].mxu0
        %v818 = vadd.f32 0.0, %v817
        %v819 = vpop.f32.mrb[0].mxu0
        %820 = vmatprep.mubr.f32.mxu0 0.0
        %821 = vmatmul.mubr.f32.gmra.mrb[0].mxu0 %v749
        %v822 = vpop.f32.mrb[0].mxu0
        %v823 = vadd.f32 0.0, %v822
        %v824 = vpop.f32.mrb[0].mxu0
        %825 = vdwg.mxu0
        %v827 = vsel %vm258, %v240, 0
        %v830 = vsel %vm258, %v241, 0
        %832 = vmatprep.subr.mxu0 0.0
        %833 = vmatpush1.msra.mxu0 %v256
        %834 = vmatprep.subr.mxu0 0.0
        %835 = vmatpush1.msra.mxu0 %v257
        %836 = vmatprep.subr.mxu0 0.0
        %837 = vmatpush1.msra.mxu0 0.0
        %838 = vmatprep.subr.mxu0 0.0
        %839 = vmatpush1.msra.mxu0 0.0
        %840 = vmatprep.subr.mxu0 0.0
        %841 = vmatpush1.msra.mxu0 0.0
        %842 = vmatprep.subr.mxu0 0.0
        %843 = vmatpush1.msra.mxu0 0.0
        %844 = vmatprep.subr.mxu0 0.0
        %845 = vmatpush1.msra.mxu0 0.0
        %846 = vmatprep.subr.mxu0 0.0
        %847 = vmatpush1.msra.mxu0 0.0
        %848 = vmatprep.subr.mxu0 0.0
        %849 = vmatpush1.msra.mxu0 0.0
        %850 = vmatprep.subr.mxu0 0.0
        %851 = vmatpush1.msra.mxu0 0.0
        %852 = vmatprep.subr.mxu0 0.0
        %853 = vmatpush1.msra.mxu0 0.0
        %854 = vmatprep.subr.mxu0 0.0
        %855 = vmatpush1.msra.mxu0 0.0
        %856 = vmatprep.subr.mxu0 0.0
        %857 = vmatpush1.msra.mxu0 0.0
        %858 = vmatprep.subr.mxu0 0.0
        %859 = vmatpush1.msra.mxu0 0.0
        %860 = vmatprep.subr.mxu0 0.0
        %861 = vmatpush1.msra.mxu0 0.0
        %862 = vmatprep.subr.mxu0 0.0
        %863 = vmatpush1.msra.mxu0 0.0
        %864 = vmatprep.subr.mxu0 0.0
        %865 = vmatpush1.msra.mxu0 0.0
        %866 = vmatprep.subr.mxu0 0.0
        %867 = vmatpush1.msra.mxu0 0.0
        %868 = vmatprep.subr.mxu0 0.0
        %869 = vmatpush1.msra.mxu0 0.0
        %870 = vmatprep.subr.mxu0 0.0
        %871 = vmatpush1.msra.mxu0 0.0
        %872 = vmatprep.subr.mxu0 0.0
        %873 = vmatpush1.msra.mxu0 0.0
        %874 = vmatprep.subr.mxu0 0.0
        %875 = vmatpush1.msra.mxu0 0.0
        %876 = vmatprep.subr.mxu0 0.0
        %877 = vmatpush1.msra.mxu0 0.0
        %878 = vmatprep.subr.mxu0 0.0
        %879 = vmatpush1.msra.mxu0 0.0
        %880 = vmatprep.subr.mxu0 0.0
        %881 = vmatpush1.msra.mxu0 0.0
        %882 = vmatprep.subr.mxu0 0.0
        %883 = vmatpush1.msra.mxu0 0.0
        %884 = vmatprep.subr.mxu0 0.0
        %885 = vmatpush1.msra.mxu0 0.0
        %886 = vmatprep.subr.mxu0 0.0
        %887 = vmatpush1.msra.mxu0 0.0
        %888 = vmatprep.subr.mxu0 0.0
        %889 = vmatpush1.msra.mxu0 0.0
        %890 = vmatprep.subr.mxu0 0.0
        %891 = vmatpush1.msra.mxu0 0.0
        %892 = vmatprep.subr.mxu0 0.0
        %893 = vmatpush1.msra.mxu0 0.0
        %894 = vmatprep.subr.mxu0 0.0
        %895 = vmatpush1.msra.mxu0 0.0
        %896 = vmatprep.mubr.f32.mxu0 0.0
        %897 = vmatmul.mubr.f32.gmra.mrb[0].mxu0 %v827
        %v898 = vpop.f32.mrb[0].mxu0
        %v899 = vadd.f32 0.0, %v898
        %v900 = vpop.f32.mrb[0].mxu0
        %901 = vmatprep.mubr.f32.mxu0 0.0
        %902 = vmatmul.mubr.f32.gmra.mrb[0].mxu0 %v830
        %v903 = vpop.f32.mrb[0].mxu0
        %v904 = vadd.f32 0.0, %v903
        %v905 = vpop.f32.mrb[0].mxu0
        %906 = vdwg.mxu0
        %v907 = vld [vmem:[%s2] sm:$0xf]
        %vm908 = vcmask 31744
        %v910 = vsel %vm908, %v332, 0
        %v913 = vsel %vm908, %v337, 0
        %v916 = vsel %vm908, %v413, 0
        %v919 = vsel %vm908, %v418, 0
        %v922 = vsel %vm908, %v494, 0
        %v925 = vsel %vm908, %v499, 0
        %v928 = vsel %vm908, %v575, 0
        %v931 = vsel %vm908, %v580, 0
        %v934 = vsel %vm908, %v656, 0
        %v937 = vsel %vm908, %v661, 0
        %v940 = vsel %vm908, %v737, 0
        %v943 = vsel %vm908, %v742, 0
        %v946 = vsel %vm908, %v818, 0
        %v949 = vsel %vm908, %v823, 0
        %v952 = vsel %vm908, %v899, 0
        %v955 = vsel %vm908, %v904, 0
        %vm957 = vcmask 1043456
        %v959 = vsel %vm957, %v907, 0
        %961 = vmatprep.subr.mxu0 0.0
        %962 = vmatpush1.msra.mxu0 %v959
        %963 = vmatprep.subr.mxu0 0.0
        %964 = vmatpush1.msra.mxu0 0.0
        %965 = vmatprep.subr.mxu0 0.0
        %966 = vmatpush1.msra.mxu0 0.0
        %967 = vmatprep.subr.mxu0 0.0
        %968 = vmatpush1.msra.mxu0 0.0
        %969 = vmatprep.subr.mxu0 0.0
        %970 = vmatpush1.msra.mxu0 0.0
        %971 = vmatprep.subr.mxu0 0.0
        %972 = vmatpush1.msra.mxu0 0.0
        %973 = vmatprep.subr.mxu0 0.0
        %974 = vmatpush1.msra.mxu0 0.0
        %975 = vmatprep.subr.mxu0 0.0
        %976 = vmatpush1.msra.mxu0 0.0
        %977 = vmatprep.subr.mxu0 0.0
        %978 = vmatpush1.msra.mxu0 0.0
        %979 = vmatprep.subr.mxu0 0.0
        %980 = vmatpush1.msra.mxu0 0.0
        %981 = vmatprep.subr.mxu0 0.0
        %982 = vmatpush1.msra.mxu0 0.0
        %983 = vmatprep.subr.mxu0 0.0
        %984 = vmatpush1.msra.mxu0 0.0
        %985 = vmatprep.subr.mxu0 0.0
        %986 = vmatpush1.msra.mxu0 0.0
        %987 = vmatprep.subr.mxu0 0.0
        %988 = vmatpush1.msra.mxu0 0.0
        %989 = vmatprep.subr.mxu0 0.0
        %990 = vmatpush1.msra.mxu0 0.0
        %991 = vmatprep.subr.mxu0 0.0
        %992 = vmatpush1.msra.mxu0 0.0
        %993 = vmatprep.subr.mxu0 0.0
        %994 = vmatpush1.msra.mxu0 0.0
        %995 = vmatprep.subr.mxu0 0.0
        %996 = vmatpush1.msra.mxu0 0.0
        %997 = vmatprep.subr.mxu0 0.0
        %998 = vmatpush1.msra.mxu0 0.0
        %999 = vmatprep.subr.mxu0 0.0
        %1000 = vmatpush1.msra.mxu0 0.0
        %1001 = vmatprep.subr.mxu0 0.0
        %1002 = vmatpush1.msra.mxu0 0.0
        %1003 = vmatprep.subr.mxu0 0.0
        %1004 = vmatpush1.msra.mxu0 0.0
        %1005 = vmatprep.subr.mxu0 0.0
        %1006 = vmatpush1.msra.mxu0 0.0
        %1007 = vmatprep.subr.mxu0 0.0
        %1008 = vmatpush1.msra.mxu0 0.0
        %1009 = vmatprep.subr.mxu0 0.0
        %1010 = vmatpush1.msra.mxu0 0.0
        %1011 = vmatprep.subr.mxu0 0.0
        %1012 = vmatpush1.msra.mxu0 0.0
        %1013 = vmatprep.subr.mxu0 0.0
        %1014 = vmatpush1.msra.mxu0 0.0
        %1015 = vmatprep.subr.mxu0 0.0
        %1016 = vmatpush1.msra.mxu0 0.0
        %1017 = vmatprep.subr.mxu0 0.0
        %1018 = vmatpush1.msra.mxu0 0.0
        %1019 = vmatprep.subr.mxu0 0.0
        %1020 = vmatpush1.msra.mxu0 0.0
        %1021 = vmatprep.subr.mxu0 0.0
        %1022 = vmatpush1.msra.mxu0 0.0
        %1023 = vmatprep.subr.mxu0 0.0
        %1024 = vmatpush1.msra.mxu0 0.0
        %1025 = vmatprep.mubr.f32.mxu0 0.0
        %1026 = vmatmul.mubr.f32.gmra.mrb[0].mxu0 %v910
        %v1027 = vpop.f32.mrb[0].mxu0
        %v1028 = vadd.f32 0.0, %v1027
        %v1029 = vpop.f32.mrb[0].mxu0
        %1030 = vmatprep.mubr.f32.mxu0 0.0
        %1031 = vmatmul.mubr.f32.gmra.mrb[0].mxu0 %v913
        %v1032 = vpop.f32.mrb[0].mxu0
        %v1033 = vadd.f32 0.0, %v1032
        %v1034 = vpop.f32.mrb[0].mxu0
        %1035 = vmatprep.mubr.f32.mxu0 0.0
        %1036 = vmatmul.mubr.f32.gmra.mrb[0].mxu0 %v916
        %v1037 = vpop.f32.mrb[0].mxu0
        %v1038 = vadd.f32 0.0, %v1037
        %v1039 = vpop.f32.mrb[0].mxu0
        %1040 = vmatprep.mubr.f32.mxu0 0.0
        %1041 = vmatmul.mubr.f32.gmra.mrb[0].mxu0 %v919
        %v1042 = vpop.f32.mrb[0].mxu0
        %v1043 = vadd.f32 0.0, %v1042
        %v1044 = vpop.f32.mrb[0].mxu0
        %1045 = vmatprep.mubr.f32.mxu0 0.0
        %1046 = vmatmul.mubr.f32.gmra.mrb[0].mxu0 %v922
        %v1047 = vpop.f32.mrb[0].mxu0
        %v1048 = vadd.f32 0.0, %v1047
        %v1049 = vpop.f32.mrb[0].mxu0
        %1050 = vmatprep.mubr.f32.mxu0 0.0
        %1051 = vmatmul.mubr.f32.gmra.mrb[0].mxu0 %v925
        %v1052 = vpop.f32.mrb[0].mxu0
        %v1053 = vadd.f32 0.0, %v1052
        %v1054 = vpop.f32.mrb[0].mxu0
        %1055 = vmatprep.mubr.f32.mxu0 0.0
        %1056 = vmatmul.mubr.f32.gmra.mrb[0].mxu0 %v928
        %v1057 = vpop.f32.mrb[0].mxu0
        %v1058 = vadd.f32 0.0, %v1057
        %v1059 = vpop.f32.mrb[0].mxu0
        %1060 = vmatprep.mubr.f32.mxu0 0.0
        %1061 = vmatmul.mubr.f32.gmra.mrb[0].mxu0 %v931
        %v1062 = vpop.f32.mrb[0].mxu0
        %v1063 = vadd.f32 0.0, %v1062
        %v1064 = vpop.f32.mrb[0].mxu0
        %1065 = vmatprep.mubr.f32.mxu0 0.0
        %1066 = vmatmul.mubr.f32.gmra.mrb[0].mxu0 %v934
        %v1067 = vpop.f32.mrb[0].mxu0
        %v1068 = vadd.f32 0.0, %v1067
        %v1069 = vpop.f32.mrb[0].mxu0
        %1070 = vmatprep.mubr.f32.mxu0 0.0
        %1071 = vmatmul.mubr.f32.gmra.mrb[0].mxu0 %v937
        %v1072 = vpop.f32.mrb[0].mxu0
        %v1073 = vadd.f32 0.0, %v1072
        %v1074 = vpop.f32.mrb[0].mxu0
        %1075 = vmatprep.mubr.f32.mxu0 0.0
        %1076 = vmatmul.mubr.f32.gmra.mrb[0].mxu0 %v940
        %v1077 = vpop.f32.mrb[0].mxu0
        %v1078 = vadd.f32 0.0, %v1077
        %v1079 = vpop.f32.mrb[0].mxu0
        %1080 = vmatprep.mubr.f32.mxu0 0.0
        %1081 = vmatmul.mubr.f32.gmra.mrb[0].mxu0 %v943
        %v1082 = vpop.f32.mrb[0].mxu0
        %v1083 = vadd.f32 0.0, %v1082
        %v1084 = vpop.f32.mrb[0].mxu0
        %1085 = vmatprep.mubr.f32.mxu0 0.0
        %1086 = vmatmul.mubr.f32.gmra.mrb[0].mxu0 %v946
        %v1087 = vpop.f32.mrb[0].mxu0
        %v1088 = vadd.f32 0.0, %v1087
        %v1089 = vpop.f32.mrb[0].mxu0
        %1090 = vmatprep.mubr.f32.mxu0 0.0
        %1091 = vmatmul.mubr.f32.gmra.mrb[0].mxu0 %v949
        %v1092 = vpop.f32.mrb[0].mxu0
        %v1093 = vadd.f32 0.0, %v1092
        %v1094 = vpop.f32.mrb[0].mxu0
        %1095 = vmatprep.mubr.f32.mxu0 0.0
        %1096 = vmatmul.mubr.f32.gmra.mrb[0].mxu0 %v952
        %v1097 = vpop.f32.mrb[0].mxu0
        %v1098 = vadd.f32 0.0, %v1097
        %v1099 = vpop.f32.mrb[0].mxu0
        %1100 = vmatprep.mubr.f32.mxu0 0.0
        %1101 = vmatmul.mubr.f32.gmra.mrb[0].mxu0 %v955
        %v1102 = vpop.f32.mrb[0].mxu0
        %v1103 = vadd.f32 0.0, %v1102
        %v1104 = vpop.f32.mrb[0].mxu0
        %1105 = vdwg.mxu0
        %v1106 = vmax.f32 %v1028, 0.0
        %v1107 = vmax.f32 %v1033, 0.0
        %v1108 = vmax.f32 %v1038, 0.0
        %v1109 = vmax.f32 %v1043, 0.0
        %v1110 = vmax.f32 %v1048, 0.0
        %v1111 = vmax.f32 %v1053, 0.0
        %v1112 = vmax.f32 %v1058, 0.0
        %v1113 = vmax.f32 %v1063, 0.0
        %v1114 = vmax.f32 %v1068, 0.0
        %v1115 = vmax.f32 %v1073, 0.0
        %v1116 = vmax.f32 %v1078, 0.0
        %v1117 = vmax.f32 %v1083, 0.0
        %v1118 = vmax.f32 %v1088, 0.0
        %v1119 = vmax.f32 %v1093, 0.0
        %v1120 = vmax.f32 %v1098, 0.0
        %v1121 = vmax.f32 %v1103, 0.0
        %1122 = vmatprep.subr.mxu0 0.0
        %1123 = vmatpush1.msra.mxu0 %v1106
        %1124 = vmatprep.subr.mxu0 0.0
        %1125 = vmatpush1.msra.mxu0 %v1107
        %1126 = vmatprep.subr.mxu0 0.0
        %1127 = vmatpush1.msra.mxu0 0.0
        %1128 = vmatprep.subr.mxu0 0.0
        %1129 = vmatpush1.msra.mxu0 0.0
        %1130 = vmatprep.subr.mxu0 0.0
        %1131 = vmatpush1.msra.mxu0 0.0
        %1132 = vmatprep.subr.mxu0 0.0
        %1133 = vmatpush1.msra.mxu0 0.0
        %1134 = vmatprep.subr.mxu0 0.0
        %1135 = vmatpush1.msra.mxu0 0.0
        %1136 = vmatprep.subr.mxu0 0.0
        %1137 = vmatpush1.msra.mxu0 0.0
        %1138 = vmatprep.subr.mxu0 0.0
        %1139 = vmatpush1.msra.mxu0 0.0
        %1140 = vmatprep.subr.mxu0 0.0
        %1141 = vmatpush1.msra.mxu0 0.0
        %1142 = vmatprep.subr.mxu0 0.0
        %1143 = vmatpush1.msra.mxu0 0.0
        %1144 = vmatprep.subr.mxu0 0.0
        %1145 = vmatpush1.msra.mxu0 0.0
        %1146 = vmatprep.subr.mxu0 0.0
        %1147 = vmatpush1.msra.mxu0 0.0
        %1148 = vmatprep.subr.mxu0 0.0
        %1149 = vmatpush1.msra.mxu0 0.0
        %1150 = vmatprep.subr.mxu0 0.0
        %1151 = vmatpush1.msra.mxu0 0.0
        %1152 = vmatprep.subr.mxu0 0.0
        %1153 = vmatpush1.msra.mxu0 0.0
        %1154 = vmatprep.subr.mxu0 0.0
        %1155 = vmatpush1.msra.mxu0 0.0
        %1156 = vmatprep.subr.mxu0 0.0
        %1157 = vmatpush1.msra.mxu0 0.0
        %1158 = vmatprep.subr.mxu0 0.0
        %1159 = vmatpush1.msra.mxu0 0.0
        %1160 = vmatprep.subr.mxu0 0.0
        %1161 = vmatpush1.msra.mxu0 0.0
        %1162 = vmatprep.subr.mxu0 0.0
        %1163 = vmatpush1.msra.mxu0 0.0
        %1164 = vmatprep.subr.mxu0 0.0
        %1165 = vmatpush1.msra.mxu0 0.0
        %1166 = vmatprep.subr.mxu0 0.0
        %1167 = vmatpush1.msra.mxu0 0.0
        %1168 = vmatprep.subr.mxu0 0.0
        %1169 = vmatpush1.msra.mxu0 0.0
        %1170 = vmatprep.subr.mxu0 0.0
        %1171 = vmatpush1.msra.mxu0 0.0
        %1172 = vmatprep.subr.mxu0 0.0
        %1173 = vmatpush1.msra.mxu0 0.0
        %1174 = vmatprep.subr.mxu0 0.0
        %1175 = vmatpush1.msra.mxu0 0.0
        %1176 = vmatprep.subr.mxu0 0.0
        %1177 = vmatpush1.msra.mxu0 0.0
        %1178 = vmatprep.subr.mxu0 0.0
        %1179 = vmatpush1.msra.mxu0 0.0
        %1180 = vmatprep.subr.mxu0 0.0
        %1181 = vmatpush1.msra.mxu0 0.0
        %1182 = vmatprep.subr.mxu0 0.0
        %1183 = vmatpush1.msra.mxu0 0.0
        %1184 = vmatprep.subr.mxu0 0.0
        %1185 = vmatpush1.msra.mxu0 0.0
        %1186 = vmatprep.mubr.f32.mxu0 0.0
        %1187 = vmatmul.mubr.f32.gmra.mrb[0].mxu0 %v260
        %v1188 = vpop.f32.mrb[0].mxu0
        %v1189 = vadd.f32 0.0, %v1188
        %v1190 = vpop.f32.mrb[0].mxu0
        %1191 = vmatprep.mubr.f32.mxu0 0.0
        %1192 = vmatmul.mubr.f32.gmra.mrb[0].mxu0 %v263
        %v1193 = vpop.f32.mrb[0].mxu0
        %v1194 = vadd.f32 0.0, %v1193
        %v1195 = vpop.f32.mrb[0].mxu0
        %1196 = vdwg.mxu0
        %1197 = vmatprep.subr.mxu0 0.0
        %1198 = vmatpush1.msra.mxu0 %v1108
        %1199 = vmatprep.subr.mxu0 0.0
        %1200 = vmatpush1.msra.mxu0 %v1109
        %1201 = vmatprep.subr.mxu0 0.0
        %1202 = vmatpush1.msra.mxu0 0.0
        %1203 = vmatprep.subr.mxu0 0.0
        %1204 = vmatpush1.msra.mxu0 0.0
        %1205 = vmatprep.subr.mxu0 0.0
        %1206 = vmatpush1.msra.mxu0 0.0
        %1207 = vmatprep.subr.mxu0 0.0
        %1208 = vmatpush1.msra.mxu0 0.0
        %1209 = vmatprep.subr.mxu0 0.0
        %1210 = vmatpush1.msra.mxu0 0.0
        %1211 = vmatprep.subr.mxu0 0.0
        %1212 = vmatpush1.msra.mxu0 0.0
        %1213 = vmatprep.subr.mxu0 0.0
        %1214 = vmatpush1.msra.mxu0 0.0
        %1215 = vmatprep.subr.mxu0 0.0
        %1216 = vmatpush1.msra.mxu0 0.0
        %1217 = vmatprep.subr.mxu0 0.0
        %1218 = vmatpush1.msra.mxu0 0.0
        %1219 = vmatprep.subr.mxu0 0.0
        %1220 = vmatpush1.msra.mxu0 0.0
        %1221 = vmatprep.subr.mxu0 0.0
        %1222 = vmatpush1.msra.mxu0 0.0
        %1223 = vmatprep.subr.mxu0 0.0
        %1224 = vmatpush1.msra.mxu0 0.0
        %1225 = vmatprep.subr.mxu0 0.0
        %1226 = vmatpush1.msra.mxu0 0.0
        %1227 = vmatprep.subr.mxu0 0.0
        %1228 = vmatpush1.msra.mxu0 0.0
        %1229 = vmatprep.subr.mxu0 0.0
        %1230 = vmatpush1.msra.mxu0 0.0
        %1231 = vmatprep.subr.mxu0 0.0
        %1232 = vmatpush1.msra.mxu0 0.0
        %1233 = vmatprep.subr.mxu0 0.0
        %1234 = vmatpush1.msra.mxu0 0.0
        %1235 = vmatprep.subr.mxu0 0.0
        %1236 = vmatpush1.msra.mxu0 0.0
        %1237 = vmatprep.subr.mxu0 0.0
        %1238 = vmatpush1.msra.mxu0 0.0
        %1239 = vmatprep.subr.mxu0 0.0
        %1240 = vmatpush1.msra.mxu0 0.0
        %1241 = vmatprep.subr.mxu0 0.0
        %1242 = vmatpush1.msra.mxu0 0.0
        %1243 = vmatprep.subr.mxu0 0.0
        %1244 = vmatpush1.msra.mxu0 0.0
        %1245 = vmatprep.subr.mxu0 0.0
        %1246 = vmatpush1.msra.mxu0 0.0
        %1247 = vmatprep.subr.mxu0 0.0
        %1248 = vmatpush1.msra.mxu0 0.0
        %1249 = vmatprep.subr.mxu0 0.0
        %1250 = vmatpush1.msra.mxu0 0.0
        %1251 = vmatprep.subr.mxu0 0.0
        %1252 = vmatpush1.msra.mxu0 0.0
        %1253 = vmatprep.subr.mxu0 0.0
        %1254 = vmatpush1.msra.mxu0 0.0
        %1255 = vmatprep.subr.mxu0 0.0
        %1256 = vmatpush1.msra.mxu0 0.0
        %1257 = vmatprep.subr.mxu0 0.0
        %1258 = vmatpush1.msra.mxu0 0.0
        %1259 = vmatprep.subr.mxu0 0.0
        %1260 = vmatpush1.msra.mxu0 0.0
        %1261 = vmatprep.mubr.f32.mxu0 0.0
        %1262 = vmatmul.mubr.f32.gmra.mrb[0].mxu0 %v341
        %v1263 = vpop.f32.mrb[0].mxu0
        %v1264 = vadd.f32 0.0, %v1263
        %v1265 = vpop.f32.mrb[0].mxu0
        %1266 = vmatprep.mubr.f32.mxu0 0.0
        %1267 = vmatmul.mubr.f32.gmra.mrb[0].mxu0 %v344
        %v1268 = vpop.f32.mrb[0].mxu0
        %v1269 = vadd.f32 0.0, %v1268
        %v1270 = vpop.f32.mrb[0].mxu0
        %1271 = vdwg.mxu0
        %1272 = vmatprep.subr.mxu0 0.0
        %1273 = vmatpush1.msra.mxu0 %v1110
        %1274 = vmatprep.subr.mxu0 0.0
        %1275 = vmatpush1.msra.mxu0 %v1111
        %1276 = vmatprep.subr.mxu0 0.0
        %1277 = vmatpush1.msra.mxu0 0.0
        %1278 = vmatprep.subr.mxu0 0.0
        %1279 = vmatpush1.msra.mxu0 0.0
        %1280 = vmatprep.subr.mxu0 0.0
        %1281 = vmatpush1.msra.mxu0 0.0
        %1282 = vmatprep.subr.mxu0 0.0
        %1283 = vmatpush1.msra.mxu0 0.0
        %1284 = vmatprep.subr.mxu0 0.0
        %1285 = vmatpush1.msra.mxu0 0.0
        %1286 = vmatprep.subr.mxu0 0.0
        %1287 = vmatpush1.msra.mxu0 0.0
        %1288 = vmatprep.subr.mxu0 0.0
        %1289 = vmatpush1.msra.mxu0 0.0
        %1290 = vmatprep.subr.mxu0 0.0
        %1291 = vmatpush1.msra.mxu0 0.0
        %1292 = vmatprep.subr.mxu0 0.0
        %1293 = vmatpush1.msra.mxu0 0.0
        %1294 = vmatprep.subr.mxu0 0.0
        %1295 = vmatpush1.msra.mxu0 0.0
        %1296 = vmatprep.subr.mxu0 0.0
        %1297 = vmatpush1.msra.mxu0 0.0
        %1298 = vmatprep.subr.mxu0 0.0
        %1299 = vmatpush1.msra.mxu0 0.0
        %1300 = vmatprep.subr.mxu0 0.0
        %1301 = vmatpush1.msra.mxu0 0.0
        %1302 = vmatprep.subr.mxu0 0.0
        %1303 = vmatpush1.msra.mxu0 0.0
        %1304 = vmatprep.subr.mxu0 0.0
        %1305 = vmatpush1.msra.mxu0 0.0
        %1306 = vmatprep.subr.mxu0 0.0
        %1307 = vmatpush1.msra.mxu0 0.0
        %1308 = vmatprep.subr.mxu0 0.0
        %1309 = vmatpush1.msra.mxu0 0.0
        %1310 = vmatprep.subr.mxu0 0.0
        %1311 = vmatpush1.msra.mxu0 0.0
        %1312 = vmatprep.subr.mxu0 0.0
        %1313 = vmatpush1.msra.mxu0 0.0
        %1314 = vmatprep.subr.mxu0 0.0
        %1315 = vmatpush1.msra.mxu0 0.0
        %1316 = vmatprep.subr.mxu0 0.0
        %1317 = vmatpush1.msra.mxu0 0.0
        %1318 = vmatprep.subr.mxu0 0.0
        %1319 = vmatpush1.msra.mxu0 0.0
        %1320 = vmatprep.subr.mxu0 0.0
        %1321 = vmatpush1.msra.mxu0 0.0
        %1322 = vmatprep.subr.mxu0 0.0
        %1323 = vmatpush1.msra.mxu0 0.0
        %1324 = vmatprep.subr.mxu0 0.0
        %1325 = vmatpush1.msra.mxu0 0.0
        %1326 = vmatprep.subr.mxu0 0.0
        %1327 = vmatpush1.msra.mxu0 0.0
        %1328 = vmatprep.subr.mxu0 0.0
        %1329 = vmatpush1.msra.mxu0 0.0
        %1330 = vmatprep.subr.mxu0 0.0
        %1331 = vmatpush1.msra.mxu0 0.0
        %1332 = vmatprep.subr.mxu0 0.0
        %1333 = vmatpush1.msra.mxu0 0.0
        %1334 = vmatprep.subr.mxu0 0.0
        %1335 = vmatpush1.msra.mxu0 0.0
        %1336 = vmatprep.mubr.f32.mxu0 0.0
        %1337 = vmatmul.mubr.f32.gmra.mrb[0].mxu0 %v422
        %v1338 = vpop.f32.mrb[0].mxu0
        %v1339 = vadd.f32 0.0, %v1338
        %v1340 = vpop.f32.mrb[0].mxu0
        %1341 = vmatprep.mubr.f32.mxu0 0.0
        %1342 = vmatmul.mubr.f32.gmra.mrb[0].mxu0 %v425
        %v1343 = vpop.f32.mrb[0].mxu0
        %v1344 = vadd.f32 0.0, %v1343
        %v1345 = vpop.f32.mrb[0].mxu0
        %1346 = vdwg.mxu0
        %1347 = vmatprep.subr.mxu0 0.0
        %1348 = vmatpush1.msra.mxu0 %v1112
        %1349 = vmatprep.subr.mxu0 0.0
        %1350 = vmatpush1.msra.mxu0 %v1113
        %1351 = vmatprep.subr.mxu0 0.0
        %1352 = vmatpush1.msra.mxu0 0.0
        %1353 = vmatprep.subr.mxu0 0.0
        %1354 = vmatpush1.msra.mxu0 0.0
        %1355 = vmatprep.subr.mxu0 0.0
        %1356 = vmatpush1.msra.mxu0 0.0
        %1357 = vmatprep.subr.mxu0 0.0
        %1358 = vmatpush1.msra.mxu0 0.0
        %1359 = vmatprep.subr.mxu0 0.0
        %1360 = vmatpush1.msra.mxu0 0.0
        %1361 = vmatprep.subr.mxu0 0.0
        %1362 = vmatpush1.msra.mxu0 0.0
        %1363 = vmatprep.subr.mxu0 0.0
        %1364 = vmatpush1.msra.mxu0 0.0
        %1365 = vmatprep.subr.mxu0 0.0
        %1366 = vmatpush1.msra.mxu0 0.0
        %1367 = vmatprep.subr.mxu0 0.0
        %1368 = vmatpush1.msra.mxu0 0.0
        %1369 = vmatprep.subr.mxu0 0.0
        %1370 = vmatpush1.msra.mxu0 0.0
        %1371 = vmatprep.subr.mxu0 0.0
        %1372 = vmatpush1.msra.mxu0 0.0
        %1373 = vmatprep.subr.mxu0 0.0
        %1374 = vmatpush1.msra.mxu0 0.0
        %1375 = vmatprep.subr.mxu0 0.0
        %1376 = vmatpush1.msra.mxu0 0.0
        %1377 = vmatprep.subr.mxu0 0.0
        %1378 = vmatpush1.msra.mxu0 0.0
        %1379 = vmatprep.subr.mxu0 0.0
        %1380 = vmatpush1.msra.mxu0 0.0
        %1381 = vmatprep.subr.mxu0 0.0
        %1382 = vmatpush1.msra.mxu0 0.0
        %1383 = vmatprep.subr.mxu0 0.0
        %1384 = vmatpush1.msra.mxu0 0.0
        %1385 = vmatprep.subr.mxu0 0.0
        %1386 = vmatpush1.msra.mxu0 0.0
        %1387 = vmatprep.subr.mxu0 0.0
        %1388 = vmatpush1.msra.mxu0 0.0
        %1389 = vmatprep.subr.mxu0 0.0
        %1390 = vmatpush1.msra.mxu0 0.0
        %1391 = vmatprep.subr.mxu0 0.0
        %1392 = vmatpush1.msra.mxu0 0.0
        %1393 = vmatprep.subr.mxu0 0.0
        %1394 = vmatpush1.msra.mxu0 0.0
        %1395 = vmatprep.subr.mxu0 0.0
        %1396 = vmatpush1.msra.mxu0 0.0
        %1397 = vmatprep.subr.mxu0 0.0
        %1398 = vmatpush1.msra.mxu0 0.0
        %1399 = vmatprep.subr.mxu0 0.0
        %1400 = vmatpush1.msra.mxu0 0.0
        %1401 = vmatprep.subr.mxu0 0.0
        %1402 = vmatpush1.msra.mxu0 0.0
        %1403 = vmatprep.subr.mxu0 0.0
        %1404 = vmatpush1.msra.mxu0 0.0
        %1405 = vmatprep.subr.mxu0 0.0
        %1406 = vmatpush1.msra.mxu0 0.0
        %1407 = vmatprep.subr.mxu0 0.0
        %1408 = vmatpush1.msra.mxu0 0.0
        %1409 = vmatprep.subr.mxu0 0.0
        %1410 = vmatpush1.msra.mxu0 0.0
        %1411 = vmatprep.mubr.f32.mxu0 0.0
        %1412 = vmatmul.mubr.f32.gmra.mrb[0].mxu0 %v503
        %v1413 = vpop.f32.mrb[0].mxu0
        %v1414 = vadd.f32 0.0, %v1413
        %v1415 = vpop.f32.mrb[0].mxu0
        %1416 = vmatprep.mubr.f32.mxu0 0.0
        %1417 = vmatmul.mubr.f32.gmra.mrb[0].mxu0 %v506
        %v1418 = vpop.f32.mrb[0].mxu0
        %v1419 = vadd.f32 0.0, %v1418
        %v1420 = vpop.f32.mrb[0].mxu0
        %1421 = vdwg.mxu0
        %1422 = vmatprep.subr.mxu0 0.0
        %1423 = vmatpush1.msra.mxu0 %v1114
        %1424 = vmatprep.subr.mxu0 0.0
        %1425 = vmatpush1.msra.mxu0 %v1115
        %1426 = vmatprep.subr.mxu0 0.0
        %1427 = vmatpush1.msra.mxu0 0.0
        %1428 = vmatprep.subr.mxu0 0.0
        %1429 = vmatpush1.msra.mxu0 0.0
        %1430 = vmatprep.subr.mxu0 0.0
        %1431 = vmatpush1.msra.mxu0 0.0
        %1432 = vmatprep.subr.mxu0 0.0
        %1433 = vmatpush1.msra.mxu0 0.0
        %1434 = vmatprep.subr.mxu0 0.0
        %1435 = vmatpush1.msra.mxu0 0.0
        %1436 = vmatprep.subr.mxu0 0.0
        %1437 = vmatpush1.msra.mxu0 0.0
        %1438 = vmatprep.subr.mxu0 0.0
        %1439 = vmatpush1.msra.mxu0 0.0
        %1440 = vmatprep.subr.mxu0 0.0
        %1441 = vmatpush1.msra.mxu0 0.0
        %1442 = vmatprep.subr.mxu0 0.0
        %1443 = vmatpush1.msra.mxu0 0.0
        %1444 = vmatprep.subr.mxu0 0.0
        %1445 = vmatpush1.msra.mxu0 0.0
        %1446 = vmatprep.subr.mxu0 0.0
        %1447 = vmatpush1.msra.mxu0 0.0
        %1448 = vmatprep.subr.mxu0 0.0
        %1449 = vmatpush1.msra.mxu0 0.0
        %1450 = vmatprep.subr.mxu0 0.0
        %1451 = vmatpush1.msra.mxu0 0.0
        %1452 = vmatprep.subr.mxu0 0.0
        %1453 = vmatpush1.msra.mxu0 0.0
        %1454 = vmatprep.subr.mxu0 0.0
        %1455 = vmatpush1.msra.mxu0 0.0
        %1456 = vmatprep.subr.mxu0 0.0
        %1457 = vmatpush1.msra.mxu0 0.0
        %1458 = vmatprep.subr.mxu0 0.0
        %1459 = vmatpush1.msra.mxu0 0.0
        %1460 = vmatprep.subr.mxu0 0.0
        %1461 = vmatpush1.msra.mxu0 0.0
        %1462 = vmatprep.subr.mxu0 0.0
        %1463 = vmatpush1.msra.mxu0 0.0
        %1464 = vmatprep.subr.mxu0 0.0
        %1465 = vmatpush1.msra.mxu0 0.0
        %1466 = vmatprep.subr.mxu0 0.0
        %1467 = vmatpush1.msra.mxu0 0.0
        %1468 = vmatprep.subr.mxu0 0.0
        %1469 = vmatpush1.msra.mxu0 0.0
        %1470 = vmatprep.subr.mxu0 0.0
        %1471 = vmatpush1.msra.mxu0 0.0
        %1472 = vmatprep.subr.mxu0 0.0
        %1473 = vmatpush1.msra.mxu0 0.0
        %1474 = vmatprep.subr.mxu0 0.0
        %1475 = vmatpush1.msra.mxu0 0.0
        %1476 = vmatprep.subr.mxu0 0.0
        %1477 = vmatpush1.msra.mxu0 0.0
        %1478 = vmatprep.subr.mxu0 0.0
        %1479 = vmatpush1.msra.mxu0 0.0
        %1480 = vmatprep.subr.mxu0 0.0
        %1481 = vmatpush1.msra.mxu0 0.0
        %1482 = vmatprep.subr.mxu0 0.0
        %1483 = vmatpush1.msra.mxu0 0.0
        %1484 = vmatprep.subr.mxu0 0.0
        %1485 = vmatpush1.msra.mxu0 0.0
        %1486 = vmatprep.mubr.f32.mxu0 0.0
        %1487 = vmatmul.mubr.f32.gmra.mrb[0].mxu0 %v584
        %v1488 = vpop.f32.mrb[0].mxu0
        %v1489 = vadd.f32 0.0, %v1488
        %v1490 = vpop.f32.mrb[0].mxu0
        %1491 = vmatprep.mubr.f32.mxu0 0.0
        %1492 = vmatmul.mubr.f32.gmra.mrb[0].mxu0 %v587
        %v1493 = vpop.f32.mrb[0].mxu0
        %v1494 = vadd.f32 0.0, %v1493
        %v1495 = vpop.f32.mrb[0].mxu0
        %1496 = vdwg.mxu0
        %1497 = vmatprep.subr.mxu0 0.0
        %1498 = vmatpush1.msra.mxu0 %v1116
        %1499 = vmatprep.subr.mxu0 0.0
        %1500 = vmatpush1.msra.mxu0 %v1117
        %1501 = vmatprep.subr.mxu0 0.0
        %1502 = vmatpush1.msra.mxu0 0.0
        %1503 = vmatprep.subr.mxu0 0.0
        %1504 = vmatpush1.msra.mxu0 0.0
        %1505 = vmatprep.subr.mxu0 0.0
        %1506 = vmatpush1.msra.mxu0 0.0
        %1507 = vmatprep.subr.mxu0 0.0
        %1508 = vmatpush1.msra.mxu0 0.0
        %1509 = vmatprep.subr.mxu0 0.0
        %1510 = vmatpush1.msra.mxu0 0.0
        %1511 = vmatprep.subr.mxu0 0.0
        %1512 = vmatpush1.msra.mxu0 0.0
        %1513 = vmatprep.subr.mxu0 0.0
        %1514 = vmatpush1.msra.mxu0 0.0
        %1515 = vmatprep.subr.mxu0 0.0
        %1516 = vmatpush1.msra.mxu0 0.0
        %1517 = vmatprep.subr.mxu0 0.0
        %1518 = vmatpush1.msra.mxu0 0.0
        %1519 = vmatprep.subr.mxu0 0.0
        %1520 = vmatpush1.msra.mxu0 0.0
        %1521 = vmatprep.subr.mxu0 0.0
        %1522 = vmatpush1.msra.mxu0 0.0
        %1523 = vmatprep.subr.mxu0 0.0
        %1524 = vmatpush1.msra.mxu0 0.0
        %1525 = vmatprep.subr.mxu0 0.0
        %1526 = vmatpush1.msra.mxu0 0.0
        %1527 = vmatprep.subr.mxu0 0.0
        %1528 = vmatpush1.msra.mxu0 0.0
        %1529 = vmatprep.subr.mxu0 0.0
        %1530 = vmatpush1.msra.mxu0 0.0
        %1531 = vmatprep.subr.mxu0 0.0
        %1532 = vmatpush1.msra.mxu0 0.0
        %1533 = vmatprep.subr.mxu0 0.0
        %1534 = vmatpush1.msra.mxu0 0.0
        %1535 = vmatprep.subr.mxu0 0.0
        %1536 = vmatpush1.msra.mxu0 0.0
        %1537 = vmatprep.subr.mxu0 0.0
        %1538 = vmatpush1.msra.mxu0 0.0
        %1539 = vmatprep.subr.mxu0 0.0
        %1540 = vmatpush1.msra.mxu0 0.0
        %1541 = vmatprep.subr.mxu0 0.0
        %1542 = vmatpush1.msra.mxu0 0.0
        %1543 = vmatprep.subr.mxu0 0.0
        %1544 = vmatpush1.msra.mxu0 0.0
        %1545 = vmatprep.subr.mxu0 0.0
        %1546 = vmatpush1.msra.mxu0 0.0
        %1547 = vmatprep.subr.mxu0 0.0
        %1548 = vmatpush1.msra.mxu0 0.0
        %1549 = vmatprep.subr.mxu0 0.0
        %1550 = vmatpush1.msra.mxu0 0.0
        %1551 = vmatprep.subr.mxu0 0.0
        %1552 = vmatpush1.msra.mxu0 0.0
        %1553 = vmatprep.subr.mxu0 0.0
        %1554 = vmatpush1.msra.mxu0 0.0
        %1555 = vmatprep.subr.mxu0 0.0
        %1556 = vmatpush1.msra.mxu0 0.0
        %1557 = vmatprep.subr.mxu0 0.0
        %1558 = vmatpush1.msra.mxu0 0.0
        %1559 = vmatprep.subr.mxu0 0.0
        %1560 = vmatpush1.msra.mxu0 0.0
        %1561 = vmatprep.mubr.f32.mxu0 0.0
        %1562 = vmatmul.mubr.f32.gmra.mrb[0].mxu0 %v665
        %v1563 = vpop.f32.mrb[0].mxu0
        %v1564 = vadd.f32 0.0, %v1563
        %v1565 = vpop.f32.mrb[0].mxu0
        %1566 = vmatprep.mubr.f32.mxu0 0.0
        %1567 = vmatmul.mubr.f32.gmra.mrb[0].mxu0 %v668
        %v1568 = vpop.f32.mrb[0].mxu0
        %v1569 = vadd.f32 0.0, %v1568
        %v1570 = vpop.f32.mrb[0].mxu0
        %1571 = vdwg.mxu0
        %1572 = vmatprep.subr.mxu0 0.0
        %1573 = vmatpush1.msra.mxu0 %v1118
        %1574 = vmatprep.subr.mxu0 0.0
        %1575 = vmatpush1.msra.mxu0 %v1119
        %1576 = vmatprep.subr.mxu0 0.0
        %1577 = vmatpush1.msra.mxu0 0.0
        %1578 = vmatprep.subr.mxu0 0.0
        %1579 = vmatpush1.msra.mxu0 0.0
        %1580 = vmatprep.subr.mxu0 0.0
        %1581 = vmatpush1.msra.mxu0 0.0
        %1582 = vmatprep.subr.mxu0 0.0
        %1583 = vmatpush1.msra.mxu0 0.0
        %1584 = vmatprep.subr.mxu0 0.0
        %1585 = vmatpush1.msra.mxu0 0.0
        %1586 = vmatprep.subr.mxu0 0.0
        %1587 = vmatpush1.msra.mxu0 0.0
        %1588 = vmatprep.subr.mxu0 0.0
        %1589 = vmatpush1.msra.mxu0 0.0
        %1590 = vmatprep.subr.mxu0 0.0
        %1591 = vmatpush1.msra.mxu0 0.0
        %1592 = vmatprep.subr.mxu0 0.0
        %1593 = vmatpush1.msra.mxu0 0.0
        %1594 = vmatprep.subr.mxu0 0.0
        %1595 = vmatpush1.msra.mxu0 0.0
        %1596 = vmatprep.subr.mxu0 0.0
        %1597 = vmatpush1.msra.mxu0 0.0
        %1598 = vmatprep.subr.mxu0 0.0
        %1599 = vmatpush1.msra.mxu0 0.0
        %1600 = vmatprep.subr.mxu0 0.0
        %1601 = vmatpush1.msra.mxu0 0.0
        %1602 = vmatprep.subr.mxu0 0.0
        %1603 = vmatpush1.msra.mxu0 0.0
        %1604 = vmatprep.subr.mxu0 0.0
        %1605 = vmatpush1.msra.mxu0 0.0
        %1606 = vmatprep.subr.mxu0 0.0
        %1607 = vmatpush1.msra.mxu0 0.0
        %1608 = vmatprep.subr.mxu0 0.0
        %1609 = vmatpush1.msra.mxu0 0.0
        %1610 = vmatprep.subr.mxu0 0.0
        %1611 = vmatpush1.msra.mxu0 0.0
        %1612 = vmatprep.subr.mxu0 0.0
        %1613 = vmatpush1.msra.mxu0 0.0
        %1614 = vmatprep.subr.mxu0 0.0
        %1615 = vmatpush1.msra.mxu0 0.0
        %1616 = vmatprep.subr.mxu0 0.0
        %1617 = vmatpush1.msra.mxu0 0.0
        %1618 = vmatprep.subr.mxu0 0.0
        %1619 = vmatpush1.msra.mxu0 0.0
        %1620 = vmatprep.subr.mxu0 0.0
        %1621 = vmatpush1.msra.mxu0 0.0
        %1622 = vmatprep.subr.mxu0 0.0
        %1623 = vmatpush1.msra.mxu0 0.0
        %1624 = vmatprep.subr.mxu0 0.0
        %1625 = vmatpush1.msra.mxu0 0.0
        %1626 = vmatprep.subr.mxu0 0.0
        %1627 = vmatpush1.msra.mxu0 0.0
        %1628 = vmatprep.subr.mxu0 0.0
        %1629 = vmatpush1.msra.mxu0 0.0
        %1630 = vmatprep.subr.mxu0 0.0
        %1631 = vmatpush1.msra.mxu0 0.0
        %1632 = vmatprep.subr.mxu0 0.0
        %1633 = vmatpush1.msra.mxu0 0.0
        %1634 = vmatprep.subr.mxu0 0.0
        %1635 = vmatpush1.msra.mxu0 0.0
        %1636 = vmatprep.mubr.f32.mxu0 0.0
        %1637 = vmatmul.mubr.f32.gmra.mrb[0].mxu0 %v746
        %v1638 = vpop.f32.mrb[0].mxu0
        %v1639 = vadd.f32 0.0, %v1638
        %v1640 = vpop.f32.mrb[0].mxu0
        %1641 = vmatprep.mubr.f32.mxu0 0.0
        %1642 = vmatmul.mubr.f32.gmra.mrb[0].mxu0 %v749
        %v1643 = vpop.f32.mrb[0].mxu0
        %v1644 = vadd.f32 0.0, %v1643
        %v1645 = vpop.f32.mrb[0].mxu0
        %1646 = vdwg.mxu0
        %1647 = vmatprep.subr.mxu0 0.0
        %1648 = vmatpush1.msra.mxu0 %v1120
        %1649 = vmatprep.subr.mxu0 0.0
        %1650 = vmatpush1.msra.mxu0 %v1121
        %1651 = vmatprep.subr.mxu0 0.0
        %1652 = vmatpush1.msra.mxu0 0.0
        %1653 = vmatprep.subr.mxu0 0.0
        %1654 = vmatpush1.msra.mxu0 0.0
        %1655 = vmatprep.subr.mxu0 0.0
        %1656 = vmatpush1.msra.mxu0 0.0
        %1657 = vmatprep.subr.mxu0 0.0
        %1658 = vmatpush1.msra.mxu0 0.0
        %1659 = vmatprep.subr.mxu0 0.0
        %1660 = vmatpush1.msra.mxu0 0.0
        %1661 = vmatprep.subr.mxu0 0.0
        %1662 = vmatpush1.msra.mxu0 0.0
        %1663 = vmatprep.subr.mxu0 0.0
        %1664 = vmatpush1.msra.mxu0 0.0
        %1665 = vmatprep.subr.mxu0 0.0
        %1666 = vmatpush1.msra.mxu0 0.0
        %1667 = vmatprep.subr.mxu0 0.0
        %1668 = vmatpush1.msra.mxu0 0.0
        %1669 = vmatprep.subr.mxu0 0.0
        %1670 = vmatpush1.msra.mxu0 0.0
        %1671 = vmatprep.subr.mxu0 0.0
        %1672 = vmatpush1.msra.mxu0 0.0
        %1673 = vmatprep.subr.mxu0 0.0
        %1674 = vmatpush1.msra.mxu0 0.0
        %1675 = vmatprep.subr.mxu0 0.0
        %1676 = vmatpush1.msra.mxu0 0.0
        %1677 = vmatprep.subr.mxu0 0.0
        %1678 = vmatpush1.msra.mxu0 0.0
        %1679 = vmatprep.subr.mxu0 0.0
        %1680 = vmatpush1.msra.mxu0 0.0
        %1681 = vmatprep.subr.mxu0 0.0
        %1682 = vmatpush1.msra.mxu0 0.0
        %1683 = vmatprep.subr.mxu0 0.0
        %1684 = vmatpush1.msra.mxu0 0.0
        %1685 = vmatprep.subr.mxu0 0.0
        %1686 = vmatpush1.msra.mxu0 0.0
        %1687 = vmatprep.subr.mxu0 0.0
        %1688 = vmatpush1.msra.mxu0 0.0
        %1689 = vmatprep.subr.mxu0 0.0
        %1690 = vmatpush1.msra.mxu0 0.0
        %1691 = vmatprep.subr.mxu0 0.0
        %1692 = vmatpush1.msra.mxu0 0.0
        %1693 = vmatprep.subr.mxu0 0.0
        %1694 = vmatpush1.msra.mxu0 0.0
        %1695 = vmatprep.subr.mxu0 0.0
        %1696 = vmatpush1.msra.mxu0 0.0
        %1697 = vmatprep.subr.mxu0 0.0
        %1698 = vmatpush1.msra.mxu0 0.0
        %1699 = vmatprep.subr.mxu0 0.0
        %1700 = vmatpush1.msra.mxu0 0.0
        %1701 = vmatprep.subr.mxu0 0.0
        %1702 = vmatpush1.msra.mxu0 0.0
        %1703 = vmatprep.subr.mxu0 0.0
        %1704 = vmatpush1.msra.mxu0 0.0
        %1705 = vmatprep.subr.mxu0 0.0
        %1706 = vmatpush1.msra.mxu0 0.0
        %1707 = vmatprep.subr.mxu0 0.0
        %1708 = vmatpush1.msra.mxu0 0.0
        %1709 = vmatprep.subr.mxu0 0.0
        %1710 = vmatpush1.msra.mxu0 0.0
        %1711 = vmatprep.mubr.f32.mxu0 0.0
        %1712 = vmatmul.mubr.f32.gmra.mrb[0].mxu0 %v827
        %v1713 = vpop.f32.mrb[0].mxu0
        %v1714 = vadd.f32 0.0, %v1713
        %v1715 = vpop.f32.mrb[0].mxu0
        %1716 = vmatprep.mubr.f32.mxu0 0.0
        %1717 = vmatmul.mubr.f32.gmra.mrb[0].mxu0 %v830
        %v1718 = vpop.f32.mrb[0].mxu0
        %v1719 = vadd.f32 0.0, %v1718
        %v1720 = vpop.f32.mrb[0].mxu0
        %1721 = vdwg.mxu0
        %v1722 = vld [vmem:[%s3] sm:$0xff]
        %v1723 = vld [vmem:[%s3 + $0x8] sm:$0xff]
        %v1724 = vld [vmem:[%s3 + $0x10] sm:$0xff]
        %v1725 = vld [vmem:[%s3 + $0x18] sm:$0xff]
        %vm1726 = vcmask 261120
        %v1728 = vsel %vm1726, %v1189, 0
        %v1731 = vsel %vm1726, %v1194, 0
        %v1734 = vsel %vm1726, %v1264, 0
        %v1737 = vsel %vm1726, %v1269, 0
        %v1740 = vsel %vm1726, %v1339, 0
        %v1743 = vsel %vm1726, %v1344, 0
        %v1746 = vsel %vm1726, %v1414, 0
        %v1749 = vsel %vm1726, %v1419, 0
        %v1752 = vsel %vm1726, %v1489, 0
        %v1755 = vsel %vm1726, %v1494, 0
        %v1758 = vsel %vm1726, %v1564, 0
        %v1761 = vsel %vm1726, %v1569, 0
        %v1764 = vsel %vm1726, %v1639, 0
        %v1767 = vsel %vm1726, %v1644, 0
        %v1770 = vsel %vm1726, %v1714, 0
        %v1773 = vsel %vm1726, %v1719, 0
        %1775 = vmatprep.subr.mxu0 0.0
        %1776 = vmatpush1.msra.mxu0 %v1722
        %1777 = vmatprep.subr.mxu0 0.0
        %1778 = vmatpush1.msra.mxu0 %v1723
        %1779 = vmatprep.subr.mxu0 0.0
        %1780 = vmatpush1.msra.mxu0 %v1724
        %1781 = vmatprep.subr.mxu0 0.0
        %1782 = vmatpush1.msra.mxu0 %v1725
        %1783 = vmatprep.subr.mxu0 0.0
        %1784 = vmatpush1.msra.mxu0 0.0
        %1785 = vmatprep.subr.mxu0 0.0
        %1786 = vmatpush1.msra.mxu0 0.0
        %1787 = vmatprep.subr.mxu0 0.0
        %1788 = vmatpush1.msra.mxu0 0.0
        %1789 = vmatprep.subr.mxu0 0.0
        %1790 = vmatpush1.msra.mxu0 0.0
        %1791 = vmatprep.subr.mxu0 0.0
        %1792 = vmatpush1.msra.mxu0 0.0
        %1793 = vmatprep.subr.mxu0 0.0
        %1794 = vmatpush1.msra.mxu0 0.0
        %1795 = vmatprep.subr.mxu0 0.0
        %1796 = vmatpush1.msra.mxu0 0.0
        %1797 = vmatprep.subr.mxu0 0.0
        %1798 = vmatpush1.msra.mxu0 0.0
        %1799 = vmatprep.subr.mxu0 0.0
        %1800 = vmatpush1.msra.mxu0 0.0
        %1801 = vmatprep.subr.mxu0 0.0
        %1802 = vmatpush1.msra.mxu0 0.0
        %1803 = vmatprep.subr.mxu0 0.0
        %1804 = vmatpush1.msra.mxu0 0.0
        %1805 = vmatprep.subr.mxu0 0.0
        %1806 = vmatpush1.msra.mxu0 0.0
        %1807 = vmatprep.subr.mxu0 0.0
        %1808 = vmatpush1.msra.mxu0 0.0
        %1809 = vmatprep.subr.mxu0 0.0
        %1810 = vmatpush1.msra.mxu0 0.0
        %1811 = vmatprep.subr.mxu0 0.0
        %1812 = vmatpush1.msra.mxu0 0.0
        %1813 = vmatprep.subr.mxu0 0.0
        %1814 = vmatpush1.msra.mxu0 0.0
        %1815 = vmatprep.subr.mxu0 0.0
        %1816 = vmatpush1.msra.mxu0 0.0
        %1817 = vmatprep.subr.mxu0 0.0
        %1818 = vmatpush1.msra.mxu0 0.0
        %1819 = vmatprep.subr.mxu0 0.0
        %1820 = vmatpush1.msra.mxu0 0.0
        %1821 = vmatprep.subr.mxu0 0.0
        %1822 = vmatpush1.msra.mxu0 0.0
        %1823 = vmatprep.subr.mxu0 0.0
        %1824 = vmatpush1.msra.mxu0 0.0
        %1825 = vmatprep.subr.mxu0 0.0
        %1826 = vmatpush1.msra.mxu0 0.0
        %1827 = vmatprep.subr.mxu0 0.0
        %1828 = vmatpush1.msra.mxu0 0.0
        %1829 = vmatprep.subr.mxu0 0.0
        %1830 = vmatpush1.msra.mxu0 0.0
        %1831 = vmatprep.subr.mxu0 0.0
        %1832 = vmatpush1.msra.mxu0 0.0
        %1833 = vmatprep.subr.mxu0 0.0
        %1834 = vmatpush1.msra.mxu0 0.0
        %1835 = vmatprep.subr.mxu0 0.0
        %1836 = vmatpush1.msra.mxu0 0.0
        %1837 = vmatprep.subr.mxu0 0.0
        %1838 = vmatpush1.msra.mxu0 0.0
        %1839 = vmatprep.mubr.f32.mxu0 0.0
        %1840 = vmatmul.mubr.f32.gmra.mrb[0].mxu0 %v1728
        %v1841 = vpop.f32.mrb[0].mxu0
        %v1842 = vadd.f32 0.0, %v1841
        %v1843 = vpop.f32.mrb[0].mxu0
        %1844 = vmatprep.mubr.f32.mxu0 0.0
        %1845 = vmatmul.mubr.f32.gmra.mrb[0].mxu0 %v1731
        %v1846 = vpop.f32.mrb[0].mxu0
        %v1847 = vadd.f32 0.0, %v1846
        %v1848 = vpop.f32.mrb[0].mxu0
        %1849 = vmatprep.mubr.f32.mxu0 0.0
        %1850 = vmatmul.mubr.f32.gmra.mrb[0].mxu0 %v1734
        %v1851 = vpop.f32.mrb[0].mxu0
        %v1852 = vadd.f32 0.0, %v1851
        %v1853 = vpop.f32.mrb[0].mxu0
        %1854 = vmatprep.mubr.f32.mxu0 0.0
        %1855 = vmatmul.mubr.f32.gmra.mrb[0].mxu0 %v1737
        %v1856 = vpop.f32.mrb[0].mxu0
        %v1857 = vadd.f32 0.0, %v1856
        %v1858 = vpop.f32.mrb[0].mxu0
        %1859 = vmatprep.mubr.f32.mxu0 0.0
        %1860 = vmatmul.mubr.f32.gmra.mrb[0].mxu0 %v1740
        %v1861 = vpop.f32.mrb[0].mxu0
        %v1862 = vadd.f32 0.0, %v1861
        %v1863 = vpop.f32.mrb[0].mxu0
        %1864 = vmatprep.mubr.f32.mxu0 0.0
        %1865 = vmatmul.mubr.f32.gmra.mrb[0].mxu0 %v1743
        %v1866 = vpop.f32.mrb[0].mxu0
        %v1867 = vadd.f32 0.0, %v1866
        %v1868 = vpop.f32.mrb[0].mxu0
        %1869 = vmatprep.mubr.f32.mxu0 0.0
        %1870 = vmatmul.mubr.f32.gmra.mrb[0].mxu0 %v1746
        %v1871 = vpop.f32.mrb[0].mxu0
        %v1872 = vadd.f32 0.0, %v1871
        %v1873 = vpop.f32.mrb[0].mxu0
        %1874 = vmatprep.mubr.f32.mxu0 0.0
        %1875 = vmatmul.mubr.f32.gmra.mrb[0].mxu0 %v1749
        %v1876 = vpop.f32.mrb[0].mxu0
        %v1877 = vadd.f32 0.0, %v1876
        %v1878 = vpop.f32.mrb[0].mxu0
        %1879 = vmatprep.mubr.f32.mxu0 0.0
        %1880 = vmatmul.mubr.f32.gmra.mrb[0].mxu0 %v1752
        %v1881 = vpop.f32.mrb[0].mxu0
        %v1882 = vadd.f32 0.0, %v1881
        %v1883 = vpop.f32.mrb[0].mxu0
        %1884 = vmatprep.mubr.f32.mxu0 0.0
        %1885 = vmatmul.mubr.f32.gmra.mrb[0].mxu0 %v1755
        %v1886 = vpop.f32.mrb[0].mxu0
        %v1887 = vadd.f32 0.0, %v1886
        %v1888 = vpop.f32.mrb[0].mxu0
        %1889 = vmatprep.mubr.f32.mxu0 0.0
        %1890 = vmatmul.mubr.f32.gmra.mrb[0].mxu0 %v1758
        %v1891 = vpop.f32.mrb[0].mxu0
        %v1892 = vadd.f32 0.0, %v1891
        %v1893 = vpop.f32.mrb[0].mxu0
        %1894 = vmatprep.mubr.f32.mxu0 0.0
        %1895 = vmatmul.mubr.f32.gmra.mrb[0].mxu0 %v1761
        %v1896 = vpop.f32.mrb[0].mxu0
        %v1897 = vadd.f32 0.0, %v1896
        %v1898 = vpop.f32.mrb[0].mxu0
        %1899 = vmatprep.mubr.f32.mxu0 0.0
        %1900 = vmatmul.mubr.f32.gmra.mrb[0].mxu0 %v1764
        %v1901 = vpop.f32.mrb[0].mxu0
        %v1902 = vadd.f32 0.0, %v1901
        %v1903 = vpop.f32.mrb[0].mxu0
        %1904 = vmatprep.mubr.f32.mxu0 0.0
        %1905 = vmatmul.mubr.f32.gmra.mrb[0].mxu0 %v1767
        %v1906 = vpop.f32.mrb[0].mxu0
        %v1907 = vadd.f32 0.0, %v1906
        %v1908 = vpop.f32.mrb[0].mxu0
        %1909 = vmatprep.mubr.f32.mxu0 0.0
        %1910 = vmatmul.mubr.f32.gmra.mrb[0].mxu0 %v1770
        %v1911 = vpop.f32.mrb[0].mxu0
        %v1912 = vadd.f32 0.0, %v1911
        %v1913 = vpop.f32.mrb[0].mxu0
        %1914 = vmatprep.mubr.f32.mxu0 0.0
        %1915 = vmatmul.mubr.f32.gmra.mrb[0].mxu0 %v1773
        %v1916 = vpop.f32.mrb[0].mxu0
        %v1917 = vadd.f32 0.0, %v1916
        %v1918 = vpop.f32.mrb[0].mxu0
        %1919 = vdwg.mxu0
        %v1920 = vmax.f32 %v1842, 0.0
        %v1921 = vmax.f32 %v1847, 0.0
        %v1922 = vmax.f32 %v1852, 0.0
        %v1923 = vmax.f32 %v1857, 0.0
        %v1924 = vmax.f32 %v1862, 0.0
        %v1925 = vmax.f32 %v1867, 0.0
        %v1926 = vmax.f32 %v1872, 0.0
        %v1927 = vmax.f32 %v1877, 0.0
        %v1928 = vmax.f32 %v1882, 0.0
        %v1929 = vmax.f32 %v1887, 0.0
        %v1930 = vmax.f32 %v1892, 0.0
        %v1931 = vmax.f32 %v1897, 0.0
        %v1932 = vmax.f32 %v1902, 0.0
        %v1933 = vmax.f32 %v1907, 0.0
        %v1934 = vmax.f32 %v1912, 0.0
        %v1935 = vmax.f32 %v1917, 0.0
        %v1936 = vsel %vm1726, %v1920, -inf
        %v1937 = vsel %vm1726, %v1921, -inf
        %v1938 = vmax.f32 %v1936, %v1937
        %v1939 = vrot.slane %v1938, 4
        %v1940 = vmax.f32 %v1938, %v1939
        %v1941 = vrot.slane %v1940, 2
        %v1942 = vmax.f32 %v1940, %v1941
        %v1943 = vrot.slane %v1942, 1
        %v1944 = vmax.f32 %v1942, %v1943
        %v1945 = vsel %vm1726, %v1922, -inf
        %v1946 = vsel %vm1726, %v1923, -inf
        %v1947 = vmax.f32 %v1945, %v1946
        %v1948 = vrot.slane %v1947, 4
        %v1949 = vmax.f32 %v1947, %v1948
        %v1950 = vrot.slane %v1949, 2
        %v1951 = vmax.f32 %v1949, %v1950
        %v1952 = vrot.slane %v1951, 1
        %v1953 = vmax.f32 %v1951, %v1952
        %v1954 = vsel %vm1726, %v1924, -inf
        %v1955 = vsel %vm1726, %v1925, -inf
        %v1956 = vmax.f32 %v1954, %v1955
        %v1957 = vrot.slane %v1956, 4
        %v1958 = vmax.f32 %v1956, %v1957
        %v1959 = vrot.slane %v1958, 2
        %v1960 = vmax.f32 %v1958, %v1959
        %v1961 = vrot.slane %v1960, 1
        %v1962 = vmax.f32 %v1960, %v1961
        %v1963 = vsel %vm1726, %v1926, -inf
        %v1964 = vsel %vm1726, %v1927, -inf
        %v1965 = vmax.f32 %v1963, %v1964
        %v1966 = vrot.slane %v1965, 4
        %v1967 = vmax.f32 %v1965, %v1966
        %v1968 = vrot.slane %v1967, 2
        %v1969 = vmax.f32 %v1967, %v1968
        %v1970 = vrot.slane %v1969, 1
        %v1971 = vmax.f32 %v1969, %v1970
        %v1972 = vsel %vm1726, %v1928, -inf
        %v1973 = vsel %vm1726, %v1929, -inf
        %v1974 = vmax.f32 %v1972, %v1973
        %v1975 = vrot.slane %v1974, 4
        %v1976 = vmax.f32 %v1974, %v1975
        %v1977 = vrot.slane %v1976, 2
        %v1978 = vmax.f32 %v1976, %v1977
        %v1979 = vrot.slane %v1978, 1
        %v1980 = vmax.f32 %v1978, %v1979
        %v1981 = vsel %vm1726, %v1930, -inf
        %v1982 = vsel %vm1726, %v1931, -inf
        %v1983 = vmax.f32 %v1981, %v1982
        %v1984 = vrot.slane %v1983, 4
        %v1985 = vmax.f32 %v1983, %v1984
        %v1986 = vrot.slane %v1985, 2
        %v1987 = vmax.f32 %v1985, %v1986
        %v1988 = vrot.slane %v1987, 1
        %v1989 = vmax.f32 %v1987, %v1988
        %v1990 = vsel %vm1726, %v1932, -inf
        %v1991 = vsel %vm1726, %v1933, -inf
        %v1992 = vmax.f32 %v1990, %v1991
        %v1993 = vrot.slane %v1992, 4
        %v1994 = vmax.f32 %v1992, %v1993
        %v1995 = vrot.slane %v1994, 2
        %v1996 = vmax.f32 %v1994, %v1995
        %v1997 = vrot.slane %v1996, 1
        %v1998 = vmax.f32 %v1996, %v1997
        %v1999 = vsel %vm1726, %v1934, -inf
        %v2000 = vsel %vm1726, %v1935, -inf
        %v2001 = vmax.f32 %v1999, %v2000
        %v2002 = vrot.slane %v2001, 4
        %v2003 = vmax.f32 %v2001, %v2002
        %v2004 = vrot.slane %v2003, 2
        %v2005 = vmax.f32 %v2003, %v2004
        %v2006 = vrot.slane %v2005, 1
        %v2007 = vmax.f32 %v2005, %v2006
        %vm2016 = vcmask 1041409
        %v2017 = vsel %vm2016, %v1953, %v1944
        %vm2018 = vcmask 1042434
        %v2019 = vsel %vm2018, %v1962, %v2017
        %vm2020 = vcmask 1043459
        %v2021 = vsel %vm2020, %v1971, %v2019
        %vm2022 = vcmask 1044484
        %v2023 = vsel %vm2022, %v1980, %v2021
        %vm2024 = vcmask 1045509
        %v2025 = vsel %vm2024, %v1989, %v2023
        %vm2026 = vcmask 1046534
        %v2027 = vsel %vm2026, %v1998, %v2025
        %vm2028 = vcmask 1047559
        %v2029 = vsel %vm2028, %v2007, %v2027
        %2031 = vst.msk [vmem:[%s211] sm:$0xff] %vm1726, %v2029
        %s2032 = sand.u32 %s120, 1
        %s2033 = scalar_lea.sflag [#allocation3], %s2032
        %s2034 = sand.u32 %s120, 1
        %s2035 = smul.addr %s2034, 8
        %s2036 = scalar_lea.vmem [#allocation2], %s2035
        // Predicated region
        $region37: #{tpu_custom_call.1} parent=35 // pred_check
          %p2037 = pneg %p130
        $region38: #{tpu_custom_call.1} parent=35 // pred_check_branch
          %2039 = sbr.rel (%p2037) target = $region40
        $region39: #{tpu_custom_call.1} parent=35 // pred_region
          %s2041 = ssub.s32 128, 128
          %2042 = vsyncadd %s2033, %s2041
          %s2043 = smul.addr %s18, 128
          %s2044 = scalar_lea.hbm %s4, %s2043
          %s2046 = sshll.u32 %s2036, 4
          %s2047 = int_to_ptr.vmem [resolvable:$true] %s2046
          %2049 = dma.vmem_to_hbm [thread:$0]  %s2047, 128, %s2044, %s2033
        $region40: #{tpu_custom_call.1} parent=35 // pred_fallthru
          _
      $region36: #{tpu_custom_call.1} parent=5 // pred_fallthru
        _
      %p2050 = scmp.le.s32.totalorder 2, %s13
      // Predicated region
      $region41: #{tpu_custom_call.1} parent=5 // pred_check
        %p2051 = pneg %p2050
      $region42: #{tpu_custom_call.1} parent=5 // pred_check_branch
        %2053 = sbr.rel (%p2051) target = $region44
      $region43: #{tpu_custom_call.1} parent=5 // pred_region
        %s2054 = ssub.s32 %s13, 2
        // Predicated region
        $region45: #{tpu_custom_call.1} parent=43 // pred_check
          %p2055 = pneg %p136
        $region46: #{tpu_custom_call.1} parent=43 // pred_check_branch
          %2057 = sbr.rel (%p2055) target = $region48
        $region47: #{tpu_custom_call.1} parent=43 // pred_region
          %s2058 = sand.u32 %s121, 1
          %s2059 = scalar_lea.sflag [#allocation3], %s2058
          %s2060 = sand.u32 %s121, 1
          %s2061 = smul.addr %s2060, 8
          %s2062 = scalar_lea.vmem [#allocation2], %s2061
          %2063 = dma.done %s2059, 128
        $region48: #{tpu_custom_call.1} parent=43 // pred_fallthru
          _
      $region44: #{tpu_custom_call.1} parent=5 // pred_fallthru
        _
    $region6: #{tpu_custom_call.1} parent=1 // loop_footer
      %s17 = sadd.s32 1, %s13
    $region7: #{tpu_custom_call.1} parent=1 // loop_footer_branch
      %12 = sbr.rel target = $region3
    $region8: #{tpu_custom_call.1} parent=1 // loop_exit
      _
    %2064 = vsyncpa [#allocation3], 1
    %s2065 = scalar_lea.sflag [#allocation3], 1
    %2066 = vsyncpa %s2065, 1

</llo_original>
